<compile_context>
chip_gen: v6e
topology: v6e:2x2x1
jax: 0.10.0
libtpu: 0.0.40
codegen_flags: <defaults>
</compile_context>

<pallas_src>
import jax
import jax.numpy as jnp
from jax.experimental import pallas as pl
from jax.experimental.pallas import tpu as pltpu


def two_layer_kernel(x_ref, w1_ref, b1_ref, w2_ref, b2_ref, o_ref):
    # Cast x f32 -> bf16 on the VPU in-kernel (overlaps with DMA / MXU work).
    x_bf = x_ref[...].astype(jnp.bfloat16)
    # Layer 1: bf16 x bf16 -> f32 accumulate on the MXU; bias-add + ReLU in f32 (VPU).
    h = jnp.dot(x_bf, w1_ref[...], preferred_element_type=jnp.float32)
    h = jnp.maximum(h + b1_ref[...], 0.0)  # .clamp(min=0)
    # Layer 2: activations re-packed to bf16 to keep the bf16 MXU path; f32 accumulate.
    y = jnp.dot(h.astype(w2_ref.dtype), w2_ref[...], preferred_element_type=jnp.float32)
    o_ref[...] = (y + b2_ref[...]).astype(o_ref.dtype)


def _vmem_capacity_bytes():
    """Per-core VMEM capacity; falls back to the smallest generation (v7x, 64 MiB)."""
    try:
        cap = getattr(pltpu.get_tpu_info(), "vmem_capacity_bytes", None)
        if cap:
            return int(cap)
    except Exception:
        pass
    return 64 * 1024 * 1024


def two_layer_net(x, w1, b1, w2, b2, *, tn=None, out_dtype=jnp.float32):
    """x: [N, D_in] f32; w1: [D_in, H]; b1: [H] or [1, H]; w2: [H, D_out]; b2: [D_out] or [1, D_out].

    Returns [N, D_out] in out_dtype (f32 default, matching the torch module).
    Weights are used in bf16 on the MXU (pre-cast them once for best perf); biases
    and accumulation stay f32.
    """
    N, D_in = x.shape
    H = w1.shape[1]
    D_out = w2.shape[1]

    # Accept torch-style 1-D biases.
    if b1.ndim == 1:
        b1 = b1.reshape(1, -1)
    if b2.ndim == 1:
        b2 = b2.reshape(1, -1)

    # Parameters: cast to bf16 only if the caller didn't already do it once outside
    # the hot path.  x is intentionally NOT cast here (done in-kernel).
    w1b = w1 if w1.dtype == jnp.bfloat16 else w1.astype(jnp.bfloat16)
    w2b = w2 if w2.dtype == jnp.bfloat16 else w2.astype(jnp.bfloat16)
    b1f = b1.astype(jnp.float32)
    b2f = b2.astype(jnp.float32)

    out_bytes = jnp.dtype(out_dtype).itemsize

    # ---- VMEM accounting (generation-aware) -----------------------------------
    # Conservatively assume Pallas double-buffers even the constant-index weight /
    # bias blocks.
    resident_bytes = 2 * (D_in * H * 2 + H * D_out * 2 + (H + D_out) * 4)
    # Per batch-row: double-buffered f32 x tile + double-buffered out tile, plus
    # in-kernel temporaries (x bf16, h f32, h bf16, y f32).
    per_row_bytes = (
        2 * D_in * 4 + 2 * D_out * out_bytes
        + D_in * 2 + H * 4 + H * 2 + D_out * 4
    )
    budget = int(0.75 * _vmem_capacity_bytes())  # ~25% headroom for compiler scratch

    if tn is None:
        avail = max(budget - resident_bytes, 8 * per_row_bytes)
        tn = max(8, min(avail // per_row_bytes, 1024))
    if tn >= N:
        tn = N                      # full-dim block (always legal)
    else:
        tn = max(8, (int(tn) // 8) * 8)  # keep sublane (8) alignment

    grid = (pl.cdiv(N, tn),)

    vmem_bytes = resident_bytes + tn * per_row_bytes
    vmem_limit = int(min(max(int(1.5 * vmem_bytes), 16 * 1024 * 1024), budget))

    cost = pl.CostEstimate(
        flops=2 * N * D_in * H + 2 * N * H * D_out,
        transcendentals=0,
        bytes_accessed=(
            N * D_in * 4                       # x (f32, cast in-kernel)
            + D_in * H * 2 + H * D_out * 2     # bf16 weights
            + (H + D_out) * 4                  # biases
            + N * D_out * out_bytes            # output
        ),
    )

    return pl.pallas_call(
        two_layer_kernel,
        out_shape=jax.ShapeDtypeStruct((N, D_out), out_dtype),
        grid_spec=pltpu.PrefetchScalarGridSpec(
            num_scalar_prefetch=0,
            grid=grid,
            in_specs=[
                pl.BlockSpec((tn, D_in), lambda i: (i, 0)),   # x: tiled over batch (f32)
                pl.BlockSpec((D_in, H), lambda i: (0, 0)),    # W1: resident (bf16)
                pl.BlockSpec((1, H), lambda i: (0, 0)),       # b1: resident (f32)
                pl.BlockSpec((H, D_out), lambda i: (0, 0)),   # W2: resident (bf16)
                pl.BlockSpec((1, D_out), lambda i: (0, 0)),   # b2: resident (f32)
            ],
            out_specs=pl.BlockSpec((tn, D_out), lambda i: (i, 0)),
        ),
        compiler_params=pltpu.CompilerParams(
            dimension_semantics=("parallel",),  # batch tiles independent (v7x megacore)
            vmem_limit_bytes=vmem_limit,
        ),
        cost_estimate=cost,
    )(x, w1b, b1f, w2b, b2f)


if __name__ == "__main__":
    # Small shapes consistent with the module.  N chosen so the auto-picked batch
    # tile (capped at 1024) yields a multi-step grid and exercises the pipeline.
    N, D_in, H, D_out = 2048, 128, 256, 128

    key = jax.random.PRNGKey(0)
    kx, kw1, kb1, kw2, kb2 = jax.random.split(key, 5)

    x = jax.random.normal(kx, (N, D_in), dtype=jnp.float32)
    # torch.nn.Linear weight is [out, in]; we initialize directly in [in, out] layout.
    w1 = jax.random.normal(kw1, (D_in, H), dtype=jnp.float32) * (1.0 / jnp.sqrt(D_in))
    b1 = jax.random.normal(kb1, (H,), dtype=jnp.float32) * 0.01
    w2 = jax.random.normal(kw2, (H, D_out), dtype=jnp.float32) * (1.0 / jnp.sqrt(H))
    b2 = jax.random.normal(kb2, (D_out,), dtype=jnp.float32) * 0.01

    # Parameters: convert to bf16 ONCE outside the hot path (kernel uses bf16 MXU path).
    w1_bf = w1.astype(jnp.bfloat16)
    w2_bf = w2.astype(jnp.bfloat16)

    y = two_layer_net(x, w1_bf, b1, w2_bf, b2)
    y = jax.block_until_ready(y)

    # Tight reference in plain JAX, mirroring the kernel's bf16 casts.
    # TODO(synk): the torch module's print(grad_fn) debug calls have no Pallas equivalent.
    xb = x.astype(jnp.bfloat16).astype(jnp.float32)
    w1f = w1_bf.astype(jnp.float32)
    w2f = w2_bf.astype(jnp.float32)
    h_ref = jnp.maximum(xb @ w1f + b1.reshape(1, -1), 0.0)
    y_ref = h_ref.astype(jnp.bfloat16).astype(jnp.float32) @ w2f + b2.reshape(1, -1)
    assert jnp.allclose(y, y_ref, atol=5e-3, rtol=5e-3), "mismatch vs bf16-cast reference"

    # Looser sanity check against the full-f32 reference (bf16 weight/activation casts).
    y_ref_f32 = jnp.maximum(x @ w1 + b1.reshape(1, -1), 0.0) @ w2 + b2.reshape(1, -1)
    assert jnp.allclose(y, y_ref_f32, atol=1e-1, rtol=1e-1), "mismatch vs f32 reference"

    print("KERNEL_OK")
</pallas_src>

<mosaic_0001>
module attributes {stable_mosaic.version = 11 : i64} {
  func.func @two_layer_kernel(%arg0: i32, %arg1: memref<1024x128xf32, #tpu.memory_space<vmem>>, %arg2: memref<128x256xbf16, #tpu.memory_space<vmem>>, %arg3: memref<1x256xf32, #tpu.memory_space<vmem>>, %arg4: memref<256x128xbf16, #tpu.memory_space<vmem>>, %arg5: memref<1x128xf32, #tpu.memory_space<vmem>>, %arg6: memref<1024x128xf32, #tpu.memory_space<vmem>>) attributes {dimension_semantics = [#tpu.dimension_semantics<parallel>], iteration_bounds = array<i64: 2>, scalar_prefetch = 0 : i64, scratch_operands = 0 : i64, tpu.core_type = #tpu.core_type<tc>, window_params = [{transform_indices = @transform_0, window_bounds = array<i64: 1024, 128>}, {pipeline_mode = #tpu.pipeline_mode<synchronous>, transform_indices = @transform_1, window_bounds = array<i64: 128, 256>}, {pipeline_mode = #tpu.pipeline_mode<synchronous>, transform_indices = @transform_2, window_bounds = array<i64: 1, 256>}, {pipeline_mode = #tpu.pipeline_mode<synchronous>, transform_indices = @transform_3, window_bounds = array<i64: 256, 128>}, {pipeline_mode = #tpu.pipeline_mode<synchronous>, transform_indices = @transform_4, window_bounds = array<i64: 1, 128>}, {transform_indices = @transform_5, window_bounds = array<i64: 1024, 128>}]} {
    %c0 = arith.constant 0 : index
    %c0_0 = arith.constant 0 : index
    %0 = vector.load %arg1[%c0, %c0_0] : memref<1024x128xf32, #tpu.memory_space<vmem>>, vector<1024x128xf32>
    %1 = arith.truncf %0 : vector<1024x128xf32> to vector<1024x128xbf16>
    %c0_1 = arith.constant 0 : index
    %c0_2 = arith.constant 0 : index
    %2 = vector.load %arg2[%c0_1, %c0_2] : memref<128x256xbf16, #tpu.memory_space<vmem>>, vector<128x256xbf16>
    %cst = arith.constant dense<0.000000e+00> : vector<1024x256xf32>
    %3 = tpu.matmul %1, %2, %cst {dimension_numbers = #tpu.dot_dimension_numbers<[1], [0], [0], [1], [0, 0, 1, 1], [], []>} : vector<1024x128xbf16>, vector<128x256xbf16>, vector<1024x256xf32> -> vector<1024x256xf32>
    %c0_3 = arith.constant 0 : index
    %c0_4 = arith.constant 0 : index
    %4 = vector.load %arg3[%c0_3, %c0_4] : memref<1x256xf32, #tpu.memory_space<vmem>>, vector<1x256xf32>
    %5 = vector.broadcast %4 : vector<1x256xf32> to vector<1024x256xf32>
    %6 = arith.addf %3, %5 : vector<1024x256xf32>
    %cst_5 = arith.constant 0.000000e+00 : f32
    %7 = vector.broadcast %cst_5 : f32 to vector<1024x256xf32>
    %8 = arith.maximumf %6, %7 : vector<1024x256xf32>
    %9 = arith.truncf %8 : vector<1024x256xf32> to vector<1024x256xbf16>
    %c0_6 = arith.constant 0 : index
    %c0_7 = arith.constant 0 : index
    %10 = vector.load %arg4[%c0_6, %c0_7] : memref<256x128xbf16, #tpu.memory_space<vmem>>, vector<256x128xbf16>
    %cst_8 = arith.constant dense<0.000000e+00> : vector<1024x128xf32>
    %11 = tpu.matmul %9, %10, %cst_8 {dimension_numbers = #tpu.dot_dimension_numbers<[1], [0], [0], [1], [0, 0, 1, 1], [], []>} : vector<1024x256xbf16>, vector<256x128xbf16>, vector<1024x128xf32> -> vector<1024x128xf32>
    %c0_9 = arith.constant 0 : index
    %c0_10 = arith.constant 0 : index
    %12 = vector.load %arg5[%c0_9, %c0_10] : memref<1x128xf32, #tpu.memory_space<vmem>>, vector<1x128xf32>
    %13 = vector.broadcast %12 : vector<1x128xf32> to vector<1024x128xf32>
    %14 = arith.addf %11, %13 : vector<1024x128xf32>
    %c0_11 = arith.constant 0 : index
    %c0_12 = arith.constant 0 : index
    %15 = vector.load %arg6[%c0_11, %c0_12] : memref<1024x128xf32, #tpu.memory_space<vmem>>, vector<1024x128xf32>
    tpu.vector_store %arg6[%c0_11, %c0_12], %14 {strides = array<i32>} : memref<1024x128xf32, #tpu.memory_space<vmem>>, vector<1024x128xf32>,
    return
  }
  func.func @transform_0(%arg0: i32) -> (i32, i32) {
    %c0_i32 = arith.constant 0 : i32
    %c0_i32_0 = arith.constant 0 : i32
    return %arg0, %c0_i32 : i32, i32
  }
  func.func @transform_1(%arg0: i32) -> (i32, i32) {
    %c0_i32 = arith.constant 0 : i32
    %c0_i32_0 = arith.constant 0 : i32
    %c0_i32_1 = arith.constant 0 : i32
    return %c0_i32, %c0_i32_0 : i32, i32
  }
  func.func @transform_2(%arg0: i32) -> (i32, i32) {
    %c0_i32 = arith.constant 0 : i32
    %c0_i32_0 = arith.constant 0 : i32
    %c0_i32_1 = arith.constant 0 : i32
    return %c0_i32, %c0_i32_0 : i32, i32
  }
  func.func @transform_3(%arg0: i32) -> (i32, i32) {
    %c0_i32 = arith.constant 0 : i32
    %c0_i32_0 = arith.constant 0 : i32
    %c0_i32_1 = arith.constant 0 : i32
    return %c0_i32, %c0_i32_0 : i32, i32
  }
  func.func @transform_4(%arg0: i32) -> (i32, i32) {
    %c0_i32 = arith.constant 0 : i32
    %c0_i32_0 = arith.constant 0 : i32
    %c0_i32_1 = arith.constant 0 : i32
    return %c0_i32, %c0_i32_0 : i32, i32
  }
  func.func @transform_5(%arg0: i32) -> (i32, i32) {
    %c0_i32 = arith.constant 0 : i32
    %c0_i32_0 = arith.constant 0 : i32
    return %arg0, %c0_i32 : i32, i32
  }
}

</mosaic_0001>

<llo_original>
// kernel: tpu_custom_call.1
$region0: #{tpu_custom_call.1}
  #allocation0 [shape = 'u32[]', space=smem, size = 0x4, offset = 0x4, fixed_abs, tag = 'smem constant byte address 0x4 - core index']
  #allocation1 [shape = 'u32[144,128]{1,0:T(1,128)}', space=vmem, size = 0x12000, scoped, tag = 'internal scratch']
  %s0 = inlined_call_operand.hbm [shape: f32[2048,128], index: 0, kind: input, shape index: {}]
  %s1 = inlined_call_operand.hbm [shape: bf16[128,256], index: 1, kind: input, shape index: {}]
  %s2 = inlined_call_operand.vmem [shape: f32[1,256], index: 2, kind: input, shape index: {}]
  %s3 = inlined_call_operand.hbm [shape: bf16[256,128], index: 3, kind: input, shape index: {}]
  %s4 = inlined_call_operand.vmem [shape: f32[1,128], index: 4, kind: input, shape index: {}]
  %s5 = inlined_call_operand.hbm [shape: f32[2048,128], index: 5, kind: output, shape index: {}]
  %s6 = sld [smem:[#allocation0]]
  $region65: #{tpu_custom_call.1} parent=0
    _
  %s8 = ssub.s32 1, %s6
  %s9 = scalar_select 0, %s8, %s6
  $region1: #{tpu_custom_call.1} parent=0
    #allocation2 [shape = 'u8[1048576]{0}', space=vmem, size = 0x100000, scoped, tag = 'input window, operand 0']
    #allocation3 [shape = 's32[2]{0}', space=sflag, size = 0x8, scoped, tag = 'scoped memory for tpu_custom_call.1']
    #allocation4 [shape = 's32[2]{0}', space=sflag, size = 0x8, scoped, tag = 'scoped memory for tpu_custom_call.1']
    #allocation5 [shape = 'u8[65536]{0}', space=vmem, size = 0x10000, scoped, tag = 'input window, operand 1, single buffered']
    #allocation6 [shape = 's32[1]{0}', space=sflag, size = 0x4, scoped, tag = 'scoped memory for tpu_custom_call.1']
    #allocation7 [shape = 'u8[65536]{0}', space=vmem, size = 0x10000, scoped, tag = 'input window, operand 3, single buffered']
    #allocation8 [shape = 'u8[1048576]{0}', space=vmem, size = 0x100000, scoped, tag = 'output window, operand 0']
    %10 = vsyncpa [#allocation3], 0
    %s11 = scalar_lea.sflag [#allocation3], 1
    %12 = vsyncpa %s11, 0
    %13 = vsyncpa [#allocation6], 0
    %14 = vsyncpa [#allocation4], 0
    %s15 = scalar_lea.sflag [#allocation4], 1
    %16 = vsyncpa %s15, 0
    loop: start=0, step=1, limit=4
    $region2: #{tpu_custom_call.1} parent=1 // loop_pre_header
      _
    $region3: #{tpu_custom_call.1} parent=1 // loop_header
      %s18 = sphi 0, %s22
      %p19 = scmp.ge.s32.totalorder %s18, 4
      %s28 = sphi 0, %s30
      %s31 = sphi 0, %s28
      %s32 = sphi 0, %s31
      %s48 = sphi 0, %s32
      %s52 = sphi 0, %s52
      %s54 = sphi 0, %s52
      %s55 = sphi 0, %s54
      %s69 = sphi 0, %s55
      %s73 = sphi 0, %s73
      %s75 = sphi 0, %s73
      %s76 = sphi 0, %s75
      %s90 = sphi 0, %s76
      %s94 = sphi 0, %s94
      %s96 = sphi 0, %s94
      %s97 = sphi 0, %s96
      %s111 = sphi 0, %s97
      %s115 = sphi 0, %s115
      %s117 = sphi 0, %s115
      %s118 = sphi 0, %s117
      %s132 = sphi 0, %s118
      %s138 = sphi 0, %s140
      %s141 = sphi 0, %s138
      %s142 = sphi 0, %s141
      %s158 = sphi 0, %s142
    $region4: #{tpu_custom_call.1} parent=1 // loop_header_branch
      %21 = sbr.rel (%p19) target = $region8
    $region5: #{tpu_custom_call.1} parent=1 // loop_body
      %s23 = ssub.s32 %s18, 1
      %s24 = ssub.s32 %s18, 2
      %s25 = sadd.s32 %s18, 1
      %s26 = ssub.s32 %s18, %s25
      %p27 = scmp.eq.s32.totalorder %s26, 0
      %s29 = sadd.s32 %s28, 1
      %s30 = scalar_select %p27, %s28, %s29
      %p33 = pneg %p27
      %p34 = scmp.eq.s32.totalorder %s18, 1
      %p35 = por %p33, %p34
      %p36 = scmp.ne.s32.totalorder %s28, %s31
      %p37 = scmp.eq.s32.totalorder %s18, 0
      %p38 = por %p36, %p37
      %p39 = scmp.ne.s32.totalorder %s28, %s31
      %p40 = scmp.eq.s32.totalorder %s23, 1
      %p41 = por %p39, %p40
      %p42 = scmp.ne.s32.totalorder %s31, %s32
      %p43 = scmp.eq.s32.totalorder %s23, 0
      %p44 = por %p42, %p43
      %p45 = scmp.ne.s32.totalorder %s31, %s32
      %p46 = scmp.eq.s32.totalorder %s24, 1
      %p47 = por %p45, %p46
      %p49 = scmp.ne.s32.totalorder %s32, %s48
      %p50 = scmp.eq.s32.totalorder %s24, 0
      %p51 = por %p49, %p50
      %s53 = sadd.s32 %s52, 1
      %p56 = scmp.eq.s32.totalorder %s18, 1
      %p57 = scmp.ne.s32.totalorder %s52, %s54
      %p58 = scmp.eq.s32.totalorder %s18, 0
      %p59 = por %p57, %p58
      %p60 = scmp.ne.s32.totalorder %s52, %s54
      %p61 = scmp.eq.s32.totalorder %s23, 1
      %p62 = por %p60, %p61
      %p63 = scmp.ne.s32.totalorder %s54, %s55
      %p64 = scmp.eq.s32.totalorder %s23, 0
      %p65 = por %p63, %p64
      %p66 = scmp.ne.s32.totalorder %s54, %s55
      %p67 = scmp.eq.s32.totalorder %s24, 1
      %p68 = por %p66, %p67
      %p70 = scmp.ne.s32.totalorder %s55, %s69
      %p71 = scmp.eq.s32.totalorder %s24, 0
      %p72 = por %p70, %p71
      %s74 = sadd.s32 %s73, 1
      %p77 = scmp.eq.s32.totalorder %s18, 1
      %p78 = scmp.ne.s32.totalorder %s73, %s75
      %p79 = scmp.eq.s32.totalorder %s18, 0
      %p80 = por %p78, %p79
      %p81 = scmp.ne.s32.totalorder %s73, %s75
      %p82 = scmp.eq.s32.totalorder %s23, 1
      %p83 = por %p81, %p82
      %p84 = scmp.ne.s32.totalorder %s75, %s76
      %p85 = scmp.eq.s32.totalorder %s23, 0
      %p86 = por %p84, %p85
      %p87 = scmp.ne.s32.totalorder %s75, %s76
      %p88 = scmp.eq.s32.totalorder %s24, 1
      %p89 = por %p87, %p88
      %p91 = scmp.ne.s32.totalorder %s76, %s90
      %p92 = scmp.eq.s32.totalorder %s24, 0
      %p93 = por %p91, %p92
      %s95 = sadd.s32 %s94, 1
      %p98 = scmp.eq.s32.totalorder %s18, 1
      %p99 = scmp.ne.s32.totalorder %s94, %s96
      %p100 = scmp.eq.s32.totalorder %s18, 0
      %p101 = por %p99, %p100
      %p102 = scmp.ne.s32.totalorder %s94, %s96
      %p103 = scmp.eq.s32.totalorder %s23, 1
      %p104 = por %p102, %p103
      %p105 = scmp.ne.s32.totalorder %s96, %s97
      %p106 = scmp.eq.s32.totalorder %s23, 0
      %p107 = por %p105, %p106
      %p108 = scmp.ne.s32.totalorder %s96, %s97
      %p109 = scmp.eq.s32.totalorder %s24, 1
      %p110 = por %p108, %p109
      %p112 = scmp.ne.s32.totalorder %s97, %s111
      %p113 = scmp.eq.s32.totalorder %s24, 0
      %p114 = por %p112, %p113
      %s116 = sadd.s32 %s115, 1
      %p119 = scmp.eq.s32.totalorder %s18, 1
      %p120 = scmp.ne.s32.totalorder %s115, %s117
      %p121 = scmp.eq.s32.totalorder %s18, 0
      %p122 = por %p120, %p121
      %p123 = scmp.ne.s32.totalorder %s115, %s117
      %p124 = scmp.eq.s32.totalorder %s23, 1
      %p125 = por %p123, %p124
      %p126 = scmp.ne.s32.totalorder %s117, %s118
      %p127 = scmp.eq.s32.totalorder %s23, 0
      %p128 = por %p126, %p127
      %p129 = scmp.ne.s32.totalorder %s117, %s118
      %p130 = scmp.eq.s32.totalorder %s24, 1
      %p131 = por %p129, %p130
      %p133 = scmp.ne.s32.totalorder %s118, %s132
      %p134 = scmp.eq.s32.totalorder %s24, 0
      %p135 = por %p133, %p134
      %s136 = ssub.s32 %s18, %s25
      %p137 = scmp.eq.s32.totalorder %s136, 0
      %s139 = sadd.s32 %s138, 1
      %s140 = scalar_select %p137, %s138, %s139
      %p143 = pneg %p137
      %p144 = scmp.eq.s32.totalorder %s18, 1
      %p145 = por %p143, %p144
      %p146 = scmp.ne.s32.totalorder %s138, %s141
      %p147 = scmp.eq.s32.totalorder %s18, 0
      %p148 = por %p146, %p147
      %p149 = scmp.ne.s32.totalorder %s138, %s141
      %p150 = scmp.eq.s32.totalorder %s23, 1
      %p151 = por %p149, %p150
      %p152 = scmp.ne.s32.totalorder %s141, %s142
      %p153 = scmp.eq.s32.totalorder %s23, 0
      %p154 = por %p152, %p153
      %p155 = scmp.ne.s32.totalorder %s141, %s142
      %p156 = scmp.eq.s32.totalorder %s24, 1
      %p157 = por %p155, %p156
      %p159 = scmp.ne.s32.totalorder %s142, %s158
      %p160 = scmp.eq.s32.totalorder %s24, 0
      %p161 = por %p159, %p160
      %p162 = scmp.le.s32.totalorder 1, %s18
      %p163 = scmp.lt.s32.totalorder %s18, 3
      %p164 = pnand %p162, %p163
      %p165 = pneg %p164
      // Predicated region
      $region9: #{tpu_custom_call.1} parent=5 // pred_check
        _
      $region10: #{tpu_custom_call.1} parent=5 // pred_check_branch
        %167 = sbr.rel (%p164) target = $region12
      $region11: #{tpu_custom_call.1} parent=5 // pred_region
        %s168 = ssub.s32 %s18, 1
        // Predicated region
        $region13: #{tpu_custom_call.1} parent=11 // pred_check
          %p169 = pneg %p65
        $region14: #{tpu_custom_call.1} parent=11 // pred_check_branch
          %171 = sbr.rel (%p169) target = $region16
        $region15: #{tpu_custom_call.1} parent=11 // pred_region
          %s173 = ssub.s32 2048, 2048
          %174 = vsyncadd [#allocation6], %s173
          %s175 = sshll.u32 [#allocation5], 4
          %s176 = int_to_ptr.vmem [resolvable:$true] %s175
          %181 = dma.hbm_to_vmem [thread:$0]  %s1, 2048, %s176, [#allocation6], 128, 128, 8
        $region16: #{tpu_custom_call.1} parent=11 // pred_fallthru
          _
        // Predicated region
        $region17: #{tpu_custom_call.1} parent=11 // pred_check
          %p182 = pneg %p86
        $region18: #{tpu_custom_call.1} parent=11 // pred_check_branch
          %184 = sbr.rel (%p182) target = $region20
        $region19: #{tpu_custom_call.1} parent=11 // pred_region
          _
        $region20: #{tpu_custom_call.1} parent=11 // pred_fallthru
          _
        // Predicated region
        $region21: #{tpu_custom_call.1} parent=11 // pred_check
          %p185 = pneg %p107
        $region22: #{tpu_custom_call.1} parent=11 // pred_check_branch
          %187 = sbr.rel (%p185) target = $region24
        $region23: #{tpu_custom_call.1} parent=11 // pred_region
          %s189 = ssub.s32 2048, 2048
          %190 = vsyncadd [#allocation6], %s189
          %s191 = sshll.u32 [#allocation7], 4
          %s192 = int_to_ptr.vmem [resolvable:$true] %s191
          %197 = dma.hbm_to_vmem [thread:$0]  %s3, 2048, %s192, [#allocation6], 64, 64, 4
        $region24: #{tpu_custom_call.1} parent=11 // pred_fallthru
          _
        // Predicated region
        $region25: #{tpu_custom_call.1} parent=11 // pred_check
          %p198 = pneg %p128
        $region26: #{tpu_custom_call.1} parent=11 // pred_check_branch
          %200 = sbr.rel (%p198) target = $region28
        $region27: #{tpu_custom_call.1} parent=11 // pred_region
          _
        $region28: #{tpu_custom_call.1} parent=11 // pred_fallthru
          _
      $region12: #{tpu_custom_call.1} parent=5 // pred_fallthru
        _
      %p201 = scmp.lt.s32.totalorder %s18, 2
      // Predicated region
      $region29: #{tpu_custom_call.1} parent=5 // pred_check
        %p202 = pneg %p201
      $region30: #{tpu_custom_call.1} parent=5 // pred_check_branch
        %204 = sbr.rel (%p202) target = $region32
      $region31: #{tpu_custom_call.1} parent=5 // pred_region
        // Predicated region
        $region33: #{tpu_custom_call.1} parent=31 // pred_check
          %p205 = pneg %p38
        $region34: #{tpu_custom_call.1} parent=31 // pred_check_branch
          %207 = sbr.rel (%p205) target = $region36
        $region35: #{tpu_custom_call.1} parent=31 // pred_region
          %s208 = sand.u32 %s28, 1
          %s209 = scalar_lea.sflag [#allocation3], %s208
          %s210 = sand.u32 %s28, 1
          %s211 = smul.addr %s210, 1024
          %s212 = scalar_lea.vmem [#allocation2], %s211
          %s213 = smul.u32 128, %s18
          %s215 = ssub.s32 16384, 16384
          %216 = vsyncadd %s209, %s215
          %s217 = smul.addr %s213, 128
          %s218 = scalar_lea.hbm %s0, %s217
          %s219 = sshll.u32 %s212, 4
          %s220 = int_to_ptr.vmem [resolvable:$true] %s219
          %225 = dma.hbm_to_vmem [thread:$0]  %s218, 16384, %s220, %s209, 128, 128, 8
        $region36: #{tpu_custom_call.1} parent=31 // pred_fallthru
          _
      $region32: #{tpu_custom_call.1} parent=5 // pred_fallthru
        _
      %p226 = scmp.le.s32.totalorder 1, %s18
      %p227 = scmp.lt.s32.totalorder %s18, 3
      %p228 = pnand %p226, %p227
      %p229 = pneg %p228
      // Predicated region
      $region37: #{tpu_custom_call.1} parent=5 // pred_check
        _
      $region38: #{tpu_custom_call.1} parent=5 // pred_check_branch
        %231 = sbr.rel (%p228) target = $region40
      $region39: #{tpu_custom_call.1} parent=5 // pred_region
        %s232 = ssub.s32 %s18, 1
        %s233 = sand.u32 %s31, 1
        %s234 = scalar_lea.sflag [#allocation3], %s233
        %s235 = sand.u32 %s31, 1
        %s236 = smul.addr %s235, 1024
        %s237 = scalar_lea.vmem [#allocation2], %s236
        // Predicated region
        $region41: #{tpu_custom_call.1} parent=39 // pred_check
          %p238 = pneg %p44
        $region42: #{tpu_custom_call.1} parent=39 // pred_check_branch
          %240 = sbr.rel (%p238) target = $region44
        $region43: #{tpu_custom_call.1} parent=39 // pred_region
          %241 = dma.done %s234, 16384
        $region44: #{tpu_custom_call.1} parent=39 // pred_fallthru
          _
        // Predicated region
        $region45: #{tpu_custom_call.1} parent=39 // pred_check
          %p242 = pneg %p65
        $region46: #{tpu_custom_call.1} parent=39 // pred_check_branch
          %244 = sbr.rel (%p242) target = $region48
        $region47: #{tpu_custom_call.1} parent=39 // pred_region
          %245 = dma.done [#allocation6], 2048
        $region48: #{tpu_custom_call.1} parent=39 // pred_fallthru
          _
        // Predicated region
        $region49: #{tpu_custom_call.1} parent=39 // pred_check
          %p246 = pneg %p107
        $region50: #{tpu_custom_call.1} parent=39 // pred_check_branch
          %248 = sbr.rel (%p246) target = $region52
        $region51: #{tpu_custom_call.1} parent=39 // pred_region
          %249 = dma.done [#allocation6], 2048
        $region52: #{tpu_custom_call.1} parent=39 // pred_fallthru
          _
        %s250 = sand.u32 %s31, 1
        %s251 = scalar_lea.sflag [#allocation3], %s250
        %s252 = sand.u32 %s31, 1
        %s253 = smul.addr %s252, 1024
        %s254 = scalar_lea.vmem [#allocation2], %s253
        %p255 = pneg %p44
        %p256 = pneg %p41
        %p257 = pneg %p65
        %p258 = pneg %p62
        %p259 = pneg %p86
        %p260 = pneg %p83
        %p261 = pneg %p107
        %p262 = pneg %p104
        %p263 = pneg %p128
        %p264 = pneg %p125
        %p265 = pneg %p154
        %p266 = pneg %p151
        %s267 = sand.u32 %s141, 1
        %s268 = scalar_lea.sflag [#allocation4], %s267
        %s269 = sand.u32 %s141, 1
        %s270 = smul.addr %s269, 1024
        %s271 = scalar_lea.vmem [#allocation8], %s270
        %s272 = smul.u32 128, %s23
        %s273 = smul.u32 128, %s23
        %v275 = vld [vmem:[%s237] sm:$0xff]
        %v276 = vld [vmem:[%s237 + $0x8] sm:$0xff]
        %v277 = vld [vmem:[%s237 + $0x10] sm:$0xff]
        %v278 = vld [vmem:[%s237 + $0x18] sm:$0xff]
        %v279 = vld [vmem:[%s237 + $0x20] sm:$0xff]
        %v280 = vld [vmem:[%s237 + $0x28] sm:$0xff]
        %v281 = vld [vmem:[%s237 + $0x30] sm:$0xff]
        %v282 = vld [vmem:[%s237 + $0x38] sm:$0xff]
        %v283 = vld [vmem:[%s237 + $0x40] sm:$0xff]
        %v284 = vld [vmem:[%s237 + $0x48] sm:$0xff]
        %v285 = vld [vmem:[%s237 + $0x50] sm:$0xff]
        %v286 = vld [vmem:[%s237 + $0x58] sm:$0xff]
        %v287 = vld [vmem:[%s237 + $0x60] sm:$0xff]
        %v288 = vld [vmem:[%s237 + $0x68] sm:$0xff]
        %v289 = vld [vmem:[%s237 + $0x70] sm:$0xff]
        %v290 = vld [vmem:[%s237 + $0x78] sm:$0xff]
        %v291 = vld [vmem:[%s237 + $0x80] sm:$0xff]
        %v292 = vld [vmem:[%s237 + $0x88] sm:$0xff]
        %v293 = vld [vmem:[%s237 + $0x90] sm:$0xff]
        %v294 = vld [vmem:[%s237 + $0x98] sm:$0xff]
        %v295 = vld [vmem:[%s237 + $0xa0] sm:$0xff]
        %v296 = vld [vmem:[%s237 + $0xa8] sm:$0xff]
        %v297 = vld [vmem:[%s237 + $0xb0] sm:$0xff]
        %v298 = vld [vmem:[%s237 + $0xb8] sm:$0xff]
        %v299 = vld [vmem:[%s237 + $0xc0] sm:$0xff]
        %v300 = vld [vmem:[%s237 + $0xc8] sm:$0xff]
        %v301 = vld [vmem:[%s237 + $0xd0] sm:$0xff]
        %v302 = vld [vmem:[%s237 + $0xd8] sm:$0xff]
        %v303 = vld [vmem:[%s237 + $0xe0] sm:$0xff]
        %v304 = vld [vmem:[%s237 + $0xe8] sm:$0xff]
        %v305 = vld [vmem:[%s237 + $0xf0] sm:$0xff]
        %v306 = vld [vmem:[%s237 + $0xf8] sm:$0xff]
        %v307 = vld [vmem:[%s237 + $0x100] sm:$0xff]
        %v308 = vld [vmem:[%s237 + $0x108] sm:$0xff]
        %v309 = vld [vmem:[%s237 + $0x110] sm:$0xff]
        %v310 = vld [vmem:[%s237 + $0x118] sm:$0xff]
        %v311 = vld [vmem:[%s237 + $0x120] sm:$0xff]
        %v312 = vld [vmem:[%s237 + $0x128] sm:$0xff]
        %v313 = vld [vmem:[%s237 + $0x130] sm:$0xff]
        %v314 = vld [vmem:[%s237 + $0x138] sm:$0xff]
        %v315 = vld [vmem:[%s237 + $0x140] sm:$0xff]
        %v316 = vld [vmem:[%s237 + $0x148] sm:$0xff]
        %v317 = vld [vmem:[%s237 + $0x150] sm:$0xff]
        %v318 = vld [vmem:[%s237 + $0x158] sm:$0xff]
        %v319 = vld [vmem:[%s237 + $0x160] sm:$0xff]
        %v320 = vld [vmem:[%s237 + $0x168] sm:$0xff]
        %v321 = vld [vmem:[%s237 + $0x170] sm:$0xff]
        %v322 = vld [vmem:[%s237 + $0x178] sm:$0xff]
        %v323 = vld [vmem:[%s237 + $0x180] sm:$0xff]
        %v324 = vld [vmem:[%s237 + $0x188] sm:$0xff]
        %v325 = vld [vmem:[%s237 + $0x190] sm:$0xff]
        %v326 = vld [vmem:[%s237 + $0x198] sm:$0xff]
        %v327 = vld [vmem:[%s237 + $0x1a0] sm:$0xff]
        %v328 = vld [vmem:[%s237 + $0x1a8] sm:$0xff]
        %v329 = vld [vmem:[%s237 + $0x1b0] sm:$0xff]
        %v330 = vld [vmem:[%s237 + $0x1b8] sm:$0xff]
        %v331 = vld [vmem:[%s237 + $0x1c0] sm:$0xff]
        %v332 = vld [vmem:[%s237 + $0x1c8] sm:$0xff]
        %v333 = vld [vmem:[%s237 + $0x1d0] sm:$0xff]
        %v334 = vld [vmem:[%s237 + $0x1d8] sm:$0xff]
        %v335 = vld [vmem:[%s237 + $0x1e0] sm:$0xff]
        %v336 = vld [vmem:[%s237 + $0x1e8] sm:$0xff]
        %v337 = vld [vmem:[%s237 + $0x1f0] sm:$0xff]
        %v338 = vld [vmem:[%s237 + $0x1f8] sm:$0xff]
        %v339 = vld [vmem:[%s237 + $0x200] sm:$0xff]
        %v340 = vld [vmem:[%s237 + $0x208] sm:$0xff]
        %v341 = vld [vmem:[%s237 + $0x210] sm:$0xff]
        %v342 = vld [vmem:[%s237 + $0x218] sm:$0xff]
        %v343 = vld [vmem:[%s237 + $0x220] sm:$0xff]
        %v344 = vld [vmem:[%s237 + $0x228] sm:$0xff]
        %v345 = vld [vmem:[%s237 + $0x230] sm:$0xff]
        %v346 = vld [vmem:[%s237 + $0x238] sm:$0xff]
        %v347 = vld [vmem:[%s237 + $0x240] sm:$0xff]
        %v348 = vld [vmem:[%s237 + $0x248] sm:$0xff]
        %v349 = vld [vmem:[%s237 + $0x250] sm:$0xff]
        %v350 = vld [vmem:[%s237 + $0x258] sm:$0xff]
        %v351 = vld [vmem:[%s237 + $0x260] sm:$0xff]
        %v352 = vld [vmem:[%s237 + $0x268] sm:$0xff]
        %v353 = vld [vmem:[%s237 + $0x270] sm:$0xff]
        %v354 = vld [vmem:[%s237 + $0x278] sm:$0xff]
        %v355 = vld [vmem:[%s237 + $0x280] sm:$0xff]
        %v356 = vld [vmem:[%s237 + $0x288] sm:$0xff]
        %v357 = vld [vmem:[%s237 + $0x290] sm:$0xff]
        %v358 = vld [vmem:[%s237 + $0x298] sm:$0xff]
        %v359 = vld [vmem:[%s237 + $0x2a0] sm:$0xff]
        %v360 = vld [vmem:[%s237 + $0x2a8] sm:$0xff]
        %v361 = vld [vmem:[%s237 + $0x2b0] sm:$0xff]
        %v362 = vld [vmem:[%s237 + $0x2b8] sm:$0xff]
        %v363 = vld [vmem:[%s237 + $0x2c0] sm:$0xff]
        %v364 = vld [vmem:[%s237 + $0x2c8] sm:$0xff]
        %v365 = vld [vmem:[%s237 + $0x2d0] sm:$0xff]
        %v366 = vld [vmem:[%s237 + $0x2d8] sm:$0xff]
        %v367 = vld [vmem:[%s237 + $0x2e0] sm:$0xff]
        %v368 = vld [vmem:[%s237 + $0x2e8] sm:$0xff]
        %v369 = vld [vmem:[%s237 + $0x2f0] sm:$0xff]
        %v370 = vld [vmem:[%s237 + $0x2f8] sm:$0xff]
        %v371 = vld [vmem:[%s237 + $0x300] sm:$0xff]
        %v372 = vld [vmem:[%s237 + $0x308] sm:$0xff]
        %v373 = vld [vmem:[%s237 + $0x310] sm:$0xff]
        %v374 = vld [vmem:[%s237 + $0x318] sm:$0xff]
        %v375 = vld [vmem:[%s237 + $0x320] sm:$0xff]
        %v376 = vld [vmem:[%s237 + $0x328] sm:$0xff]
        %v377 = vld [vmem:[%s237 + $0x330] sm:$0xff]
        %v378 = vld [vmem:[%s237 + $0x338] sm:$0xff]
        %v379 = vld [vmem:[%s237 + $0x340] sm:$0xff]
        %v380 = vld [vmem:[%s237 + $0x348] sm:$0xff]
        %v381 = vld [vmem:[%s237 + $0x350] sm:$0xff]
        %v382 = vld [vmem:[%s237 + $0x358] sm:$0xff]
        %v383 = vld [vmem:[%s237 + $0x360] sm:$0xff]
        %v384 = vld [vmem:[%s237 + $0x368] sm:$0xff]
        %v385 = vld [vmem:[%s237 + $0x370] sm:$0xff]
        %v386 = vld [vmem:[%s237 + $0x378] sm:$0xff]
        %v387 = vld [vmem:[%s237 + $0x380] sm:$0xff]
        %v388 = vld [vmem:[%s237 + $0x388] sm:$0xff]
        %v389 = vld [vmem:[%s237 + $0x390] sm:$0xff]
        %v390 = vld [vmem:[%s237 + $0x398] sm:$0xff]
        %v391 = vld [vmem:[%s237 + $0x3a0] sm:$0xff]
        %v392 = vld [vmem:[%s237 + $0x3a8] sm:$0xff]
        %v393 = vld [vmem:[%s237 + $0x3b0] sm:$0xff]
        %v394 = vld [vmem:[%s237 + $0x3b8] sm:$0xff]
        %v395 = vld [vmem:[%s237 + $0x3c0] sm:$0xff]
        %v396 = vld [vmem:[%s237 + $0x3c8] sm:$0xff]
        %v397 = vld [vmem:[%s237 + $0x3d0] sm:$0xff]
        %v398 = vld [vmem:[%s237 + $0x3d8] sm:$0xff]
        %v399 = vld [vmem:[%s237 + $0x3e0] sm:$0xff]
        %v400 = vld [vmem:[%s237 + $0x3e8] sm:$0xff]
        %v401 = vld [vmem:[%s237 + $0x3f0] sm:$0xff]
        %v402 = vld [vmem:[%s237 + $0x3f8] sm:$0xff]
        %v403 = vpack.c.bf16 %v276, %v275
        %v404 = vpack.c.bf16 %v278, %v277
        %v405 = vpack.c.bf16 %v280, %v279
        %v406 = vpack.c.bf16 %v282, %v281
        %v407 = vpack.c.bf16 %v284, %v283
        %v408 = vpack.c.bf16 %v286, %v285
        %v409 = vpack.c.bf16 %v288, %v287
        %v410 = vpack.c.bf16 %v290, %v289
        %v411 = vpack.c.bf16 %v292, %v291
        %v412 = vpack.c.bf16 %v294, %v293
        %v413 = vpack.c.bf16 %v296, %v295
        %v414 = vpack.c.bf16 %v298, %v297
        %v415 = vpack.c.bf16 %v300, %v299
        %v416 = vpack.c.bf16 %v302, %v301
        %v417 = vpack.c.bf16 %v304, %v303
        %v418 = vpack.c.bf16 %v306, %v305
        %v419 = vpack.c.bf16 %v308, %v307
        %v420 = vpack.c.bf16 %v310, %v309
        %v421 = vpack.c.bf16 %v312, %v311
        %v422 = vpack.c.bf16 %v314, %v313
        %v423 = vpack.c.bf16 %v316, %v315
        %v424 = vpack.c.bf16 %v318, %v317
        %v425 = vpack.c.bf16 %v320, %v319
        %v426 = vpack.c.bf16 %v322, %v321
        %v427 = vpack.c.bf16 %v324, %v323
        %v428 = vpack.c.bf16 %v326, %v325
        %v429 = vpack.c.bf16 %v328, %v327
        %v430 = vpack.c.bf16 %v330, %v329
        %v431 = vpack.c.bf16 %v332, %v331
        %v432 = vpack.c.bf16 %v334, %v333
        %v433 = vpack.c.bf16 %v336, %v335
        %v434 = vpack.c.bf16 %v338, %v337
        %v435 = vpack.c.bf16 %v340, %v339
        %v436 = vpack.c.bf16 %v342, %v341
        %v437 = vpack.c.bf16 %v344, %v343
        %v438 = vpack.c.bf16 %v346, %v345
        %v439 = vpack.c.bf16 %v348, %v347
        %v440 = vpack.c.bf16 %v350, %v349
        %v441 = vpack.c.bf16 %v352, %v351
        %v442 = vpack.c.bf16 %v354, %v353
        %v443 = vpack.c.bf16 %v356, %v355
        %v444 = vpack.c.bf16 %v358, %v357
        %v445 = vpack.c.bf16 %v360, %v359
        %v446 = vpack.c.bf16 %v362, %v361
        %v447 = vpack.c.bf16 %v364, %v363
        %v448 = vpack.c.bf16 %v366, %v365
        %v449 = vpack.c.bf16 %v368, %v367
        %v450 = vpack.c.bf16 %v370, %v369
        %v451 = vpack.c.bf16 %v372, %v371
        %v452 = vpack.c.bf16 %v374, %v373
        %v453 = vpack.c.bf16 %v376, %v375
        %v454 = vpack.c.bf16 %v378, %v377
        %v455 = vpack.c.bf16 %v380, %v379
        %v456 = vpack.c.bf16 %v382, %v381
        %v457 = vpack.c.bf16 %v384, %v383
        %v458 = vpack.c.bf16 %v386, %v385
        %v459 = vpack.c.bf16 %v388, %v387
        %v460 = vpack.c.bf16 %v390, %v389
        %v461 = vpack.c.bf16 %v392, %v391
        %v462 = vpack.c.bf16 %v394, %v393
        %v463 = vpack.c.bf16 %v396, %v395
        %v464 = vpack.c.bf16 %v398, %v397
        %v465 = vpack.c.bf16 %v400, %v399
        %v466 = vpack.c.bf16 %v402, %v401
        %v467 = vld [vmem:[#allocation5] sm:$0xff]
        %v468 = vld [vmem:[#allocation5 + $0x8] sm:$0xff]
        %v469 = vld [vmem:[#allocation5 + $0x10] sm:$0xff]
        %v470 = vld [vmem:[#allocation5 + $0x18] sm:$0xff]
        %v471 = vld [vmem:[#allocation5 + $0x20] sm:$0xff]
        %v472 = vld [vmem:[#allocation5 + $0x28] sm:$0xff]
        %v473 = vld [vmem:[#allocation5 + $0x30] sm:$0xff]
        %v474 = vld [vmem:[#allocation5 + $0x38] sm:$0xff]
        %v475 = vld [vmem:[#allocation5 + $0x40] sm:$0xff]
        %v476 = vld [vmem:[#allocation5 + $0x48] sm:$0xff]
        %v477 = vld [vmem:[#allocation5 + $0x50] sm:$0xff]
        %v478 = vld [vmem:[#allocation5 + $0x58] sm:$0xff]
        %v479 = vld [vmem:[#allocation5 + $0x60] sm:$0xff]
        %v480 = vld [vmem:[#allocation5 + $0x68] sm:$0xff]
        %v481 = vld [vmem:[#allocation5 + $0x70] sm:$0xff]
        %v482 = vld [vmem:[#allocation5 + $0x78] sm:$0xff]
        %v483 = vld [vmem:[%s2] sm:$0x3]
        %v485 = vlaneseq
        %v486 = vshrl.u32 %v485, 7
        %v487 = vsub.s32 0, %v486
        %v488 = vrot.slane %v483, %v487
        %v489 = vlaneseq
        %v490 = vshrl.u32 %v489, 7
        %v491 = vsub.s32 1, %v490
        %v492 = vrot.slane %v483, %v491
        %v511 = vunpack.c.l.b16 %v467
        %v512 = vunpack.c.h.b16 %v467
        %v513 = vunpack.c.l.b16 %v468
        %v514 = vunpack.c.h.b16 %v468
        %v515 = vunpack.c.l.b16 %v469
        %v516 = vunpack.c.h.b16 %v469
        %v517 = vunpack.c.l.b16 %v470
        %v518 = vunpack.c.h.b16 %v470
        %v519 = vunpack.c.l.b16 %v471
        %v520 = vunpack.c.h.b16 %v471
        %v521 = vunpack.c.l.b16 %v472
        %v522 = vunpack.c.h.b16 %v472
        %v523 = vunpack.c.l.b16 %v473
        %v524 = vunpack.c.h.b16 %v473
        %v525 = vunpack.c.l.b16 %v474
        %v526 = vunpack.c.h.b16 %v474
        %v527 = vunpack.c.l.b16 %v475
        %v528 = vunpack.c.h.b16 %v475
        %v529 = vunpack.c.l.b16 %v476
        %v530 = vunpack.c.h.b16 %v476
        %v531 = vunpack.c.l.b16 %v477
        %v532 = vunpack.c.h.b16 %v477
        %v533 = vunpack.c.l.b16 %v478
        %v534 = vunpack.c.h.b16 %v478
        %v535 = vunpack.c.l.b16 %v479
        %v536 = vunpack.c.h.b16 %v479
        %v537 = vunpack.c.l.b16 %v480
        %v538 = vunpack.c.h.b16 %v480
        %v539 = vunpack.c.l.b16 %v481
        %v540 = vunpack.c.h.b16 %v481
        %v541 = vunpack.c.l.b16 %v482
        %v542 = vunpack.c.h.b16 %v482
        %v543 = vpack.c.b16 %v513, %v511
        %v544 = vpack.c.b16 %v514, %v512
        %v545 = vpack.c.b16 %v517, %v515
        %v546 = vpack.c.b16 %v518, %v516
        %v547 = vpack.c.b16 %v521, %v519
        %v548 = vpack.c.b16 %v522, %v520
        %v549 = vpack.c.b16 %v525, %v523
        %v550 = vpack.c.b16 %v526, %v524
        %v551 = vpack.c.b16 %v529, %v527
        %v552 = vpack.c.b16 %v530, %v528
        %v553 = vpack.c.b16 %v533, %v531
        %v554 = vpack.c.b16 %v534, %v532
        %v555 = vpack.c.b16 %v537, %v535
        %v556 = vpack.c.b16 %v538, %v536
        %v557 = vpack.c.b16 %v541, %v539
        %v558 = vpack.c.b16 %v542, %v540
        %575 = vmatprep.subr.bf16.mxu0 %v558
        %576 = vmatpush1.bf16.msra.mxu0 %v557
        %577 = vmatprep.subr.bf16.mxu0 %v556
        %578 = vmatpush1.bf16.msra.mxu0 %v555
        %579 = vmatprep.subr.bf16.mxu0 %v554
        %580 = vmatpush1.bf16.msra.mxu0 %v553
        %581 = vmatprep.subr.bf16.mxu0 %v552
        %582 = vmatpush1.bf16.msra.mxu0 %v551
        %583 = vmatprep.subr.bf16.mxu0 %v550
        %584 = vmatpush1.bf16.msra.mxu0 %v549
        %585 = vmatprep.subr.bf16.mxu0 %v548
        %586 = vmatpush1.bf16.msra.mxu0 %v547
        %587 = vmatprep.subr.bf16.mxu0 %v546
        %588 = vmatpush1.bf16.msra.mxu0 %v545
        %589 = vmatprep.subr.bf16.mxu0 %v544
        %590 = vmatpush1.bf16.msra.mxu0 %v543
        %591 = vmatprep.subr.bf16.mxu0 0
        %592 = vmatpush2.bf16.msra.mxu0 0
        %593 = vmatprep.subr.bf16.mxu0 0
        %594 = vmatpush2.bf16.msra.mxu0 0
        %595 = vmatprep.subr.bf16.mxu0 0
        %596 = vmatpush2.bf16.msra.mxu0 0
        %597 = vmatprep.subr.bf16.mxu0 0
        %598 = vmatpush2.bf16.msra.mxu0 0
        %599 = vmatprep.subr.bf16.mxu0 0
        %600 = vmatpush2.bf16.msra.mxu0 0
        %601 = vmatprep.subr.bf16.mxu0 0
        %602 = vmatpush2.bf16.msra.mxu0 0
        %603 = vmatprep.subr.bf16.mxu0 0
        %604 = vmatpush2.bf16.msra.mxu0 0
        %605 = vmatprep.subr.bf16.mxu0 0
        %606 = vmatpush2.bf16.msra.mxu0 0
        %607 = vmatprep.mubr.bf16.mxu0 0
        %608 = vmatmul.mubr.bf16.gmra.mxu0 %v403
        %v609 = vpop.f32.mrf.mxu0
        %v610 = vadd.f32 %v488, %v609
        %v611 = vpop.f32.mrf.mxu0
        %v612 = vadd.f32 %v492, %v611
        %v613 = vpop.f32.mrf.mxu0
        %v614 = vadd.f32 %v488, %v613
        %v615 = vpop.f32.mrf.mxu0
        %v616 = vadd.f32 %v492, %v615
        %617 = vmatprep.mubr.bf16.mxu0 0
        %618 = vmatmul.mubr.bf16.gmra.mxu0 %v404
        %v619 = vpop.f32.mrf.mxu0
        %v620 = vadd.f32 %v488, %v619
        %v621 = vpop.f32.mrf.mxu0
        %v622 = vadd.f32 %v492, %v621
        %v623 = vpop.f32.mrf.mxu0
        %v624 = vadd.f32 %v488, %v623
        %v625 = vpop.f32.mrf.mxu0
        %v626 = vadd.f32 %v492, %v625
        %627 = vmatprep.mubr.bf16.mxu0 0
        %628 = vmatmul.mubr.bf16.gmra.mxu0 %v405
        %v629 = vpop.f32.mrf.mxu0
        %v630 = vadd.f32 %v488, %v629
        %v631 = vpop.f32.mrf.mxu0
        %v632 = vadd.f32 %v492, %v631
        %v633 = vpop.f32.mrf.mxu0
        %v634 = vadd.f32 %v488, %v633
        %v635 = vpop.f32.mrf.mxu0
        %v636 = vadd.f32 %v492, %v635
        %637 = vmatprep.mubr.bf16.mxu0 0
        %638 = vmatmul.mubr.bf16.gmra.mxu0 %v406
        %v639 = vpop.f32.mrf.mxu0
        %v640 = vadd.f32 %v488, %v639
        %v641 = vpop.f32.mrf.mxu0
        %v642 = vadd.f32 %v492, %v641
        %v643 = vpop.f32.mrf.mxu0
        %v644 = vadd.f32 %v488, %v643
        %v645 = vpop.f32.mrf.mxu0
        %v646 = vadd.f32 %v492, %v645
        %647 = vmatprep.mubr.bf16.mxu0 0
        %648 = vmatmul.mubr.bf16.gmra.mxu0 %v407
        %v649 = vpop.f32.mrf.mxu0
        %v650 = vadd.f32 %v488, %v649
        %v651 = vpop.f32.mrf.mxu0
        %v652 = vadd.f32 %v492, %v651
        %v653 = vpop.f32.mrf.mxu0
        %v654 = vadd.f32 %v488, %v653
        %v655 = vpop.f32.mrf.mxu0
        %v656 = vadd.f32 %v492, %v655
        %657 = vmatprep.mubr.bf16.mxu0 0
        %658 = vmatmul.mubr.bf16.gmra.mxu0 %v408
        %v659 = vpop.f32.mrf.mxu0
        %v660 = vadd.f32 %v488, %v659
        %v661 = vpop.f32.mrf.mxu0
        %v662 = vadd.f32 %v492, %v661
        %v663 = vpop.f32.mrf.mxu0
        %v664 = vadd.f32 %v488, %v663
        %v665 = vpop.f32.mrf.mxu0
        %v666 = vadd.f32 %v492, %v665
        %667 = vmatprep.mubr.bf16.mxu0 0
        %668 = vmatmul.mubr.bf16.gmra.mxu0 %v409
        %v669 = vpop.f32.mrf.mxu0
        %v670 = vadd.f32 %v488, %v669
        %v671 = vpop.f32.mrf.mxu0
        %v672 = vadd.f32 %v492, %v671
        %v673 = vpop.f32.mrf.mxu0
        %v674 = vadd.f32 %v488, %v673
        %v675 = vpop.f32.mrf.mxu0
        %v676 = vadd.f32 %v492, %v675
        %677 = vmatprep.mubr.bf16.mxu0 0
        %678 = vmatmul.mubr.bf16.gmra.mxu0 %v410
        %v679 = vpop.f32.mrf.mxu0
        %v680 = vadd.f32 %v488, %v679
        %v681 = vpop.f32.mrf.mxu0
        %v682 = vadd.f32 %v492, %v681
        %v683 = vpop.f32.mrf.mxu0
        %v684 = vadd.f32 %v488, %v683
        %v685 = vpop.f32.mrf.mxu0
        %v686 = vadd.f32 %v492, %v685
        %687 = vmatprep.mubr.bf16.mxu0 0
        %688 = vmatmul.mubr.bf16.gmra.mxu0 %v411
        %v689 = vpop.f32.mrf.mxu0
        %v690 = vadd.f32 %v488, %v689
        %v691 = vpop.f32.mrf.mxu0
        %v692 = vadd.f32 %v492, %v691
        %v693 = vpop.f32.mrf.mxu0
        %v694 = vadd.f32 %v488, %v693
        %v695 = vpop.f32.mrf.mxu0
        %v696 = vadd.f32 %v492, %v695
        %697 = vmatprep.mubr.bf16.mxu0 0
        %698 = vmatmul.mubr.bf16.gmra.mxu0 %v412
        %v699 = vpop.f32.mrf.mxu0
        %v700 = vadd.f32 %v488, %v699
        %v701 = vpop.f32.mrf.mxu0
        %v702 = vadd.f32 %v492, %v701
        %v703 = vpop.f32.mrf.mxu0
        %v704 = vadd.f32 %v488, %v703
        %v705 = vpop.f32.mrf.mxu0
        %v706 = vadd.f32 %v492, %v705
        %707 = vmatprep.mubr.bf16.mxu0 0
        %708 = vmatmul.mubr.bf16.gmra.mxu0 %v413
        %v709 = vpop.f32.mrf.mxu0
        %v710 = vadd.f32 %v488, %v709
        %v711 = vpop.f32.mrf.mxu0
        %v712 = vadd.f32 %v492, %v711
        %v713 = vpop.f32.mrf.mxu0
        %v714 = vadd.f32 %v488, %v713
        %v715 = vpop.f32.mrf.mxu0
        %v716 = vadd.f32 %v492, %v715
        %717 = vmatprep.mubr.bf16.mxu0 0
        %718 = vmatmul.mubr.bf16.gmra.mxu0 %v414
        %v719 = vpop.f32.mrf.mxu0
        %v720 = vadd.f32 %v488, %v719
        %v721 = vpop.f32.mrf.mxu0
        %v722 = vadd.f32 %v492, %v721
        %v723 = vpop.f32.mrf.mxu0
        %v724 = vadd.f32 %v488, %v723
        %v725 = vpop.f32.mrf.mxu0
        %v726 = vadd.f32 %v492, %v725
        %727 = vmatprep.mubr.bf16.mxu0 0
        %728 = vmatmul.mubr.bf16.gmra.mxu0 %v415
        %v729 = vpop.f32.mrf.mxu0
        %v730 = vadd.f32 %v488, %v729
        %v731 = vpop.f32.mrf.mxu0
        %v732 = vadd.f32 %v492, %v731
        %v733 = vpop.f32.mrf.mxu0
        %v734 = vadd.f32 %v488, %v733
        %v735 = vpop.f32.mrf.mxu0
        %v736 = vadd.f32 %v492, %v735
        %737 = vmatprep.mubr.bf16.mxu0 0
        %738 = vmatmul.mubr.bf16.gmra.mxu0 %v416
        %v739 = vpop.f32.mrf.mxu0
        %v740 = vadd.f32 %v488, %v739
        %v741 = vpop.f32.mrf.mxu0
        %v742 = vadd.f32 %v492, %v741
        %v743 = vpop.f32.mrf.mxu0
        %v744 = vadd.f32 %v488, %v743
        %v745 = vpop.f32.mrf.mxu0
        %v746 = vadd.f32 %v492, %v745
        %747 = vmatprep.mubr.bf16.mxu0 0
        %748 = vmatmul.mubr.bf16.gmra.mxu0 %v417
        %v749 = vpop.f32.mrf.mxu0
        %v750 = vadd.f32 %v488, %v749
        %v751 = vpop.f32.mrf.mxu0
        %v752 = vadd.f32 %v492, %v751
        %v753 = vpop.f32.mrf.mxu0
        %v754 = vadd.f32 %v488, %v753
        %v755 = vpop.f32.mrf.mxu0
        %v756 = vadd.f32 %v492, %v755
        %757 = vmatprep.mubr.bf16.mxu0 0
        %758 = vmatmul.mubr.bf16.gmra.mxu0 %v418
        %v759 = vpop.f32.mrf.mxu0
        %v760 = vadd.f32 %v488, %v759
        %v761 = vpop.f32.mrf.mxu0
        %v762 = vadd.f32 %v492, %v761
        %v763 = vpop.f32.mrf.mxu0
        %v764 = vadd.f32 %v488, %v763
        %v765 = vpop.f32.mrf.mxu0
        %v766 = vadd.f32 %v492, %v765
        %767 = vmatprep.mubr.bf16.mxu0 0
        %768 = vmatmul.mubr.bf16.gmra.mxu0 %v419
        %v769 = vpop.f32.mrf.mxu0
        %v770 = vadd.f32 %v488, %v769
        %v771 = vpop.f32.mrf.mxu0
        %v772 = vadd.f32 %v492, %v771
        %v773 = vpop.f32.mrf.mxu0
        %v774 = vadd.f32 %v488, %v773
        %v775 = vpop.f32.mrf.mxu0
        %v776 = vadd.f32 %v492, %v775
        %777 = vmatprep.mubr.bf16.mxu0 0
        %778 = vmatmul.mubr.bf16.gmra.mxu0 %v420
        %v779 = vpop.f32.mrf.mxu0
        %v780 = vadd.f32 %v488, %v779
        %v781 = vpop.f32.mrf.mxu0
        %v782 = vadd.f32 %v492, %v781
        %v783 = vpop.f32.mrf.mxu0
        %v784 = vadd.f32 %v488, %v783
        %v785 = vpop.f32.mrf.mxu0
        %v786 = vadd.f32 %v492, %v785
        %787 = vmatprep.mubr.bf16.mxu0 0
        %788 = vmatmul.mubr.bf16.gmra.mxu0 %v421
        %v789 = vpop.f32.mrf.mxu0
        %v790 = vadd.f32 %v488, %v789
        %v791 = vpop.f32.mrf.mxu0
        %v792 = vadd.f32 %v492, %v791
        %v793 = vpop.f32.mrf.mxu0
        %v794 = vadd.f32 %v488, %v793
        %v795 = vpop.f32.mrf.mxu0
        %v796 = vadd.f32 %v492, %v795
        %797 = vmatprep.mubr.bf16.mxu0 0
        %798 = vmatmul.mubr.bf16.gmra.mxu0 %v422
        %v799 = vpop.f32.mrf.mxu0
        %v800 = vadd.f32 %v488, %v799
        %v801 = vpop.f32.mrf.mxu0
        %v802 = vadd.f32 %v492, %v801
        %v803 = vpop.f32.mrf.mxu0
        %v804 = vadd.f32 %v488, %v803
        %v805 = vpop.f32.mrf.mxu0
        %v806 = vadd.f32 %v492, %v805
        %807 = vmatprep.mubr.bf16.mxu0 0
        %808 = vmatmul.mubr.bf16.gmra.mxu0 %v423
        %v809 = vpop.f32.mrf.mxu0
        %v810 = vadd.f32 %v488, %v809
        %v811 = vpop.f32.mrf.mxu0
        %v812 = vadd.f32 %v492, %v811
        %v813 = vpop.f32.mrf.mxu0
        %v814 = vadd.f32 %v488, %v813
        %v815 = vpop.f32.mrf.mxu0
        %v816 = vadd.f32 %v492, %v815
        %817 = vmatprep.mubr.bf16.mxu0 0
        %818 = vmatmul.mubr.bf16.gmra.mxu0 %v424
        %v819 = vpop.f32.mrf.mxu0
        %v820 = vadd.f32 %v488, %v819
        %v821 = vpop.f32.mrf.mxu0
        %v822 = vadd.f32 %v492, %v821
        %v823 = vpop.f32.mrf.mxu0
        %v824 = vadd.f32 %v488, %v823
        %v825 = vpop.f32.mrf.mxu0
        %v826 = vadd.f32 %v492, %v825
        %827 = vmatprep.mubr.bf16.mxu0 0
        %828 = vmatmul.mubr.bf16.gmra.mxu0 %v425
        %v829 = vpop.f32.mrf.mxu0
        %v830 = vadd.f32 %v488, %v829
        %v831 = vpop.f32.mrf.mxu0
        %v832 = vadd.f32 %v492, %v831
        %v833 = vpop.f32.mrf.mxu0
        %v834 = vadd.f32 %v488, %v833
        %v835 = vpop.f32.mrf.mxu0
        %v836 = vadd.f32 %v492, %v835
        %837 = vmatprep.mubr.bf16.mxu0 0
        %838 = vmatmul.mubr.bf16.gmra.mxu0 %v426
        %v839 = vpop.f32.mrf.mxu0
        %v840 = vadd.f32 %v488, %v839
        %v841 = vpop.f32.mrf.mxu0
        %v842 = vadd.f32 %v492, %v841
        %v843 = vpop.f32.mrf.mxu0
        %v844 = vadd.f32 %v488, %v843
        %v845 = vpop.f32.mrf.mxu0
        %v846 = vadd.f32 %v492, %v845
        %847 = vmatprep.mubr.bf16.mxu0 0
        %848 = vmatmul.mubr.bf16.gmra.mxu0 %v427
        %v849 = vpop.f32.mrf.mxu0
        %v850 = vadd.f32 %v488, %v849
        %v851 = vpop.f32.mrf.mxu0
        %v852 = vadd.f32 %v492, %v851
        %v853 = vpop.f32.mrf.mxu0
        %v854 = vadd.f32 %v488, %v853
        %v855 = vpop.f32.mrf.mxu0
        %v856 = vadd.f32 %v492, %v855
        %857 = vmatprep.mubr.bf16.mxu0 0
        %858 = vmatmul.mubr.bf16.gmra.mxu0 %v428
        %v859 = vpop.f32.mrf.mxu0
        %v860 = vadd.f32 %v488, %v859
        %v861 = vpop.f32.mrf.mxu0
        %v862 = vadd.f32 %v492, %v861
        %v863 = vpop.f32.mrf.mxu0
        %v864 = vadd.f32 %v488, %v863
        %v865 = vpop.f32.mrf.mxu0
        %v866 = vadd.f32 %v492, %v865
        %867 = vmatprep.mubr.bf16.mxu0 0
        %868 = vmatmul.mubr.bf16.gmra.mxu0 %v429
        %v869 = vpop.f32.mrf.mxu0
        %v870 = vadd.f32 %v488, %v869
        %v871 = vpop.f32.mrf.mxu0
        %v872 = vadd.f32 %v492, %v871
        %v873 = vpop.f32.mrf.mxu0
        %v874 = vadd.f32 %v488, %v873
        %v875 = vpop.f32.mrf.mxu0
        %v876 = vadd.f32 %v492, %v875
        %877 = vmatprep.mubr.bf16.mxu0 0
        %878 = vmatmul.mubr.bf16.gmra.mxu0 %v430
        %v879 = vpop.f32.mrf.mxu0
        %v880 = vadd.f32 %v488, %v879
        %v881 = vpop.f32.mrf.mxu0
        %v882 = vadd.f32 %v492, %v881
        %v883 = vpop.f32.mrf.mxu0
        %v884 = vadd.f32 %v488, %v883
        %v885 = vpop.f32.mrf.mxu0
        %v886 = vadd.f32 %v492, %v885
        %887 = vmatprep.mubr.bf16.mxu0 0
        %888 = vmatmul.mubr.bf16.gmra.mxu0 %v431
        %v889 = vpop.f32.mrf.mxu0
        %v890 = vadd.f32 %v488, %v889
        %v891 = vpop.f32.mrf.mxu0
        %v892 = vadd.f32 %v492, %v891
        %v893 = vpop.f32.mrf.mxu0
        %v894 = vadd.f32 %v488, %v893
        %v895 = vpop.f32.mrf.mxu0
        %v896 = vadd.f32 %v492, %v895
        %897 = vmatprep.mubr.bf16.mxu0 0
        %898 = vmatmul.mubr.bf16.gmra.mxu0 %v432
        %v899 = vpop.f32.mrf.mxu0
        %v900 = vadd.f32 %v488, %v899
        %v901 = vpop.f32.mrf.mxu0
        %v902 = vadd.f32 %v492, %v901
        %v903 = vpop.f32.mrf.mxu0
        %v904 = vadd.f32 %v488, %v903
        %v905 = vpop.f32.mrf.mxu0
        %v906 = vadd.f32 %v492, %v905
        %907 = vmatprep.mubr.bf16.mxu0 0
        %908 = vmatmul.mubr.bf16.gmra.mxu0 %v433
        %v909 = vpop.f32.mrf.mxu0
        %v910 = vadd.f32 %v488, %v909
        %v911 = vpop.f32.mrf.mxu0
        %v912 = vadd.f32 %v492, %v911
        %v913 = vpop.f32.mrf.mxu0
        %v914 = vadd.f32 %v488, %v913
        %v915 = vpop.f32.mrf.mxu0
        %v916 = vadd.f32 %v492, %v915
        %917 = vmatprep.mubr.bf16.mxu0 0
        %918 = vmatmul.mubr.bf16.gmra.mxu0 %v434
        %v919 = vpop.f32.mrf.mxu0
        %v920 = vadd.f32 %v488, %v919
        %v921 = vpop.f32.mrf.mxu0
        %v922 = vadd.f32 %v492, %v921
        %v923 = vpop.f32.mrf.mxu0
        %v924 = vadd.f32 %v488, %v923
        %v925 = vpop.f32.mrf.mxu0
        %v926 = vadd.f32 %v492, %v925
        %927 = vmatprep.mubr.bf16.mxu0 0
        %928 = vmatmul.mubr.bf16.gmra.mxu0 %v435
        %v929 = vpop.f32.mrf.mxu0
        %v930 = vadd.f32 %v488, %v929
        %v931 = vpop.f32.mrf.mxu0
        %v932 = vadd.f32 %v492, %v931
        %v933 = vpop.f32.mrf.mxu0
        %v934 = vadd.f32 %v488, %v933
        %v935 = vpop.f32.mrf.mxu0
        %v936 = vadd.f32 %v492, %v935
        %937 = vmatprep.mubr.bf16.mxu0 0
        %938 = vmatmul.mubr.bf16.gmra.mxu0 %v436
        %v939 = vpop.f32.mrf.mxu0
        %v940 = vadd.f32 %v488, %v939
        %v941 = vpop.f32.mrf.mxu0
        %v942 = vadd.f32 %v492, %v941
        %v943 = vpop.f32.mrf.mxu0
        %v944 = vadd.f32 %v488, %v943
        %v945 = vpop.f32.mrf.mxu0
        %v946 = vadd.f32 %v492, %v945
        %947 = vmatprep.mubr.bf16.mxu0 0
        %948 = vmatmul.mubr.bf16.gmra.mxu0 %v437
        %v949 = vpop.f32.mrf.mxu0
        %v950 = vadd.f32 %v488, %v949
        %v951 = vpop.f32.mrf.mxu0
        %v952 = vadd.f32 %v492, %v951
        %v953 = vpop.f32.mrf.mxu0
        %v954 = vadd.f32 %v488, %v953
        %v955 = vpop.f32.mrf.mxu0
        %v956 = vadd.f32 %v492, %v955
        %957 = vmatprep.mubr.bf16.mxu0 0
        %958 = vmatmul.mubr.bf16.gmra.mxu0 %v438
        %v959 = vpop.f32.mrf.mxu0
        %v960 = vadd.f32 %v488, %v959
        %v961 = vpop.f32.mrf.mxu0
        %v962 = vadd.f32 %v492, %v961
        %v963 = vpop.f32.mrf.mxu0
        %v964 = vadd.f32 %v488, %v963
        %v965 = vpop.f32.mrf.mxu0
        %v966 = vadd.f32 %v492, %v965
        %967 = vmatprep.mubr.bf16.mxu0 0
        %968 = vmatmul.mubr.bf16.gmra.mxu0 %v439
        %v969 = vpop.f32.mrf.mxu0
        %v970 = vadd.f32 %v488, %v969
        %v971 = vpop.f32.mrf.mxu0
        %v972 = vadd.f32 %v492, %v971
        %v973 = vpop.f32.mrf.mxu0
        %v974 = vadd.f32 %v488, %v973
        %v975 = vpop.f32.mrf.mxu0
        %v976 = vadd.f32 %v492, %v975
        %977 = vmatprep.mubr.bf16.mxu0 0
        %978 = vmatmul.mubr.bf16.gmra.mxu0 %v440
        %v979 = vpop.f32.mrf.mxu0
        %v980 = vadd.f32 %v488, %v979
        %v981 = vpop.f32.mrf.mxu0
        %v982 = vadd.f32 %v492, %v981
        %v983 = vpop.f32.mrf.mxu0
        %v984 = vadd.f32 %v488, %v983
        %v985 = vpop.f32.mrf.mxu0
        %v986 = vadd.f32 %v492, %v985
        %987 = vmatprep.mubr.bf16.mxu0 0
        %988 = vmatmul.mubr.bf16.gmra.mxu0 %v441
        %v989 = vpop.f32.mrf.mxu0
        %v990 = vadd.f32 %v488, %v989
        %v991 = vpop.f32.mrf.mxu0
        %v992 = vadd.f32 %v492, %v991
        %v993 = vpop.f32.mrf.mxu0
        %v994 = vadd.f32 %v488, %v993
        %v995 = vpop.f32.mrf.mxu0
        %v996 = vadd.f32 %v492, %v995
        %997 = vmatprep.mubr.bf16.mxu0 0
        %998 = vmatmul.mubr.bf16.gmra.mxu0 %v442
        %v999 = vpop.f32.mrf.mxu0
        %v1000 = vadd.f32 %v488, %v999
        %v1001 = vpop.f32.mrf.mxu0
        %v1002 = vadd.f32 %v492, %v1001
        %v1003 = vpop.f32.mrf.mxu0
        %v1004 = vadd.f32 %v488, %v1003
        %v1005 = vpop.f32.mrf.mxu0
        %v1006 = vadd.f32 %v492, %v1005
        %1007 = vmatprep.mubr.bf16.mxu0 0
        %1008 = vmatmul.mubr.bf16.gmra.mxu0 %v443
        %v1009 = vpop.f32.mrf.mxu0
        %v1010 = vadd.f32 %v488, %v1009
        %v1011 = vpop.f32.mrf.mxu0
        %v1012 = vadd.f32 %v492, %v1011
        %v1013 = vpop.f32.mrf.mxu0
        %v1014 = vadd.f32 %v488, %v1013
        %v1015 = vpop.f32.mrf.mxu0
        %v1016 = vadd.f32 %v492, %v1015
        %1017 = vmatprep.mubr.bf16.mxu0 0
        %1018 = vmatmul.mubr.bf16.gmra.mxu0 %v444
        %v1019 = vpop.f32.mrf.mxu0
        %v1020 = vadd.f32 %v488, %v1019
        %v1021 = vpop.f32.mrf.mxu0
        %v1022 = vadd.f32 %v492, %v1021
        %v1023 = vpop.f32.mrf.mxu0
        %v1024 = vadd.f32 %v488, %v1023
        %v1025 = vpop.f32.mrf.mxu0
        %v1026 = vadd.f32 %v492, %v1025
        %1027 = vmatprep.mubr.bf16.mxu0 0
        %1028 = vmatmul.mubr.bf16.gmra.mxu0 %v445
        %v1029 = vpop.f32.mrf.mxu0
        %v1030 = vadd.f32 %v488, %v1029
        %v1031 = vpop.f32.mrf.mxu0
        %v1032 = vadd.f32 %v492, %v1031
        %v1033 = vpop.f32.mrf.mxu0
        %v1034 = vadd.f32 %v488, %v1033
        %v1035 = vpop.f32.mrf.mxu0
        %v1036 = vadd.f32 %v492, %v1035
        %1037 = vmatprep.mubr.bf16.mxu0 0
        %1038 = vmatmul.mubr.bf16.gmra.mxu0 %v446
        %v1039 = vpop.f32.mrf.mxu0
        %v1040 = vadd.f32 %v488, %v1039
        %v1041 = vpop.f32.mrf.mxu0
        %v1042 = vadd.f32 %v492, %v1041
        %v1043 = vpop.f32.mrf.mxu0
        %v1044 = vadd.f32 %v488, %v1043
        %v1045 = vpop.f32.mrf.mxu0
        %v1046 = vadd.f32 %v492, %v1045
        %1047 = vmatprep.mubr.bf16.mxu0 0
        %1048 = vmatmul.mubr.bf16.gmra.mxu0 %v447
        %v1049 = vpop.f32.mrf.mxu0
        %v1050 = vadd.f32 %v488, %v1049
        %v1051 = vpop.f32.mrf.mxu0
        %v1052 = vadd.f32 %v492, %v1051
        %v1053 = vpop.f32.mrf.mxu0
        %v1054 = vadd.f32 %v488, %v1053
        %v1055 = vpop.f32.mrf.mxu0
        %v1056 = vadd.f32 %v492, %v1055
        %1057 = vmatprep.mubr.bf16.mxu0 0
        %1058 = vmatmul.mubr.bf16.gmra.mxu0 %v448
        %v1059 = vpop.f32.mrf.mxu0
        %v1060 = vadd.f32 %v488, %v1059
        %v1061 = vpop.f32.mrf.mxu0
        %v1062 = vadd.f32 %v492, %v1061
        %v1063 = vpop.f32.mrf.mxu0
        %v1064 = vadd.f32 %v488, %v1063
        %v1065 = vpop.f32.mrf.mxu0
        %v1066 = vadd.f32 %v492, %v1065
        %1067 = vmatprep.mubr.bf16.mxu0 0
        %1068 = vmatmul.mubr.bf16.gmra.mxu0 %v449
        %v1069 = vpop.f32.mrf.mxu0
        %v1070 = vadd.f32 %v488, %v1069
        %v1071 = vpop.f32.mrf.mxu0
        %v1072 = vadd.f32 %v492, %v1071
        %v1073 = vpop.f32.mrf.mxu0
        %v1074 = vadd.f32 %v488, %v1073
        %v1075 = vpop.f32.mrf.mxu0
        %v1076 = vadd.f32 %v492, %v1075
        %1077 = vmatprep.mubr.bf16.mxu0 0
        %1078 = vmatmul.mubr.bf16.gmra.mxu0 %v450
        %v1079 = vpop.f32.mrf.mxu0
        %v1080 = vadd.f32 %v488, %v1079
        %v1081 = vpop.f32.mrf.mxu0
        %v1082 = vadd.f32 %v492, %v1081
        %v1083 = vpop.f32.mrf.mxu0
        %v1084 = vadd.f32 %v488, %v1083
        %v1085 = vpop.f32.mrf.mxu0
        %v1086 = vadd.f32 %v492, %v1085
        %1087 = vmatprep.mubr.bf16.mxu0 0
        %1088 = vmatmul.mubr.bf16.gmra.mxu0 %v451
        %v1089 = vpop.f32.mrf.mxu0
        %v1090 = vadd.f32 %v488, %v1089
        %v1091 = vpop.f32.mrf.mxu0
        %v1092 = vadd.f32 %v492, %v1091
        %v1093 = vpop.f32.mrf.mxu0
        %v1094 = vadd.f32 %v488, %v1093
        %v1095 = vpop.f32.mrf.mxu0
        %v1096 = vadd.f32 %v492, %v1095
        %1097 = vmatprep.mubr.bf16.mxu0 0
        %1098 = vmatmul.mubr.bf16.gmra.mxu0 %v452
        %v1099 = vpop.f32.mrf.mxu0
        %v1100 = vadd.f32 %v488, %v1099
        %v1101 = vpop.f32.mrf.mxu0
        %v1102 = vadd.f32 %v492, %v1101
        %v1103 = vpop.f32.mrf.mxu0
        %v1104 = vadd.f32 %v488, %v1103
        %v1105 = vpop.f32.mrf.mxu0
        %v1106 = vadd.f32 %v492, %v1105
        %1107 = vmatprep.mubr.bf16.mxu0 0
        %1108 = vmatmul.mubr.bf16.gmra.mxu0 %v453
        %v1109 = vpop.f32.mrf.mxu0
        %v1110 = vadd.f32 %v488, %v1109
        %v1111 = vpop.f32.mrf.mxu0
        %v1112 = vadd.f32 %v492, %v1111
        %v1113 = vpop.f32.mrf.mxu0
        %v1114 = vadd.f32 %v488, %v1113
        %v1115 = vpop.f32.mrf.mxu0
        %v1116 = vadd.f32 %v492, %v1115
        %1117 = vmatprep.mubr.bf16.mxu0 0
        %1118 = vmatmul.mubr.bf16.gmra.mxu0 %v454
        %v1119 = vpop.f32.mrf.mxu0
        %v1120 = vadd.f32 %v488, %v1119
        %v1121 = vpop.f32.mrf.mxu0
        %v1122 = vadd.f32 %v492, %v1121
        %v1123 = vpop.f32.mrf.mxu0
        %v1124 = vadd.f32 %v488, %v1123
        %v1125 = vpop.f32.mrf.mxu0
        %v1126 = vadd.f32 %v492, %v1125
        %1127 = vmatprep.mubr.bf16.mxu0 0
        %1128 = vmatmul.mubr.bf16.gmra.mxu0 %v455
        %v1129 = vpop.f32.mrf.mxu0
        %v1130 = vadd.f32 %v488, %v1129
        %v1131 = vpop.f32.mrf.mxu0
        %v1132 = vadd.f32 %v492, %v1131
        %v1133 = vpop.f32.mrf.mxu0
        %v1134 = vadd.f32 %v488, %v1133
        %v1135 = vpop.f32.mrf.mxu0
        %v1136 = vadd.f32 %v492, %v1135
        %1137 = vmatprep.mubr.bf16.mxu0 0
        %1138 = vmatmul.mubr.bf16.gmra.mxu0 %v456
        %v1139 = vpop.f32.mrf.mxu0
        %v1140 = vadd.f32 %v488, %v1139
        %v1141 = vpop.f32.mrf.mxu0
        %v1142 = vadd.f32 %v492, %v1141
        %v1143 = vpop.f32.mrf.mxu0
        %v1144 = vadd.f32 %v488, %v1143
        %v1145 = vpop.f32.mrf.mxu0
        %v1146 = vadd.f32 %v492, %v1145
        %1147 = vmatprep.mubr.bf16.mxu0 0
        %1148 = vmatmul.mubr.bf16.gmra.mxu0 %v457
        %v1149 = vpop.f32.mrf.mxu0
        %v1150 = vadd.f32 %v488, %v1149
        %v1151 = vpop.f32.mrf.mxu0
        %v1152 = vadd.f32 %v492, %v1151
        %v1153 = vpop.f32.mrf.mxu0
        %v1154 = vadd.f32 %v488, %v1153
        %v1155 = vpop.f32.mrf.mxu0
        %v1156 = vadd.f32 %v492, %v1155
        %1157 = vmatprep.mubr.bf16.mxu0 0
        %1158 = vmatmul.mubr.bf16.gmra.mxu0 %v458
        %v1159 = vpop.f32.mrf.mxu0
        %v1160 = vadd.f32 %v488, %v1159
        %v1161 = vpop.f32.mrf.mxu0
        %v1162 = vadd.f32 %v492, %v1161
        %v1163 = vpop.f32.mrf.mxu0
        %v1164 = vadd.f32 %v488, %v1163
        %v1165 = vpop.f32.mrf.mxu0
        %v1166 = vadd.f32 %v492, %v1165
        %1167 = vmatprep.mubr.bf16.mxu0 0
        %1168 = vmatmul.mubr.bf16.gmra.mxu0 %v459
        %v1169 = vpop.f32.mrf.mxu0
        %v1170 = vadd.f32 %v488, %v1169
        %v1171 = vpop.f32.mrf.mxu0
        %v1172 = vadd.f32 %v492, %v1171
        %v1173 = vpop.f32.mrf.mxu0
        %v1174 = vadd.f32 %v488, %v1173
        %v1175 = vpop.f32.mrf.mxu0
        %v1176 = vadd.f32 %v492, %v1175
        %1177 = vmatprep.mubr.bf16.mxu0 0
        %1178 = vmatmul.mubr.bf16.gmra.mxu0 %v460
        %v1179 = vpop.f32.mrf.mxu0
        %v1180 = vadd.f32 %v488, %v1179
        %v1181 = vpop.f32.mrf.mxu0
        %v1182 = vadd.f32 %v492, %v1181
        %v1183 = vpop.f32.mrf.mxu0
        %v1184 = vadd.f32 %v488, %v1183
        %v1185 = vpop.f32.mrf.mxu0
        %v1186 = vadd.f32 %v492, %v1185
        %1187 = vmatprep.mubr.bf16.mxu0 0
        %1188 = vmatmul.mubr.bf16.gmra.mxu0 %v461
        %v1189 = vpop.f32.mrf.mxu0
        %v1190 = vadd.f32 %v488, %v1189
        %v1191 = vpop.f32.mrf.mxu0
        %v1192 = vadd.f32 %v492, %v1191
        %v1193 = vpop.f32.mrf.mxu0
        %v1194 = vadd.f32 %v488, %v1193
        %v1195 = vpop.f32.mrf.mxu0
        %v1196 = vadd.f32 %v492, %v1195
        %1197 = vmatprep.mubr.bf16.mxu0 0
        %1198 = vmatmul.mubr.bf16.gmra.mxu0 %v462
        %v1199 = vpop.f32.mrf.mxu0
        %v1200 = vadd.f32 %v488, %v1199
        %v1201 = vpop.f32.mrf.mxu0
        %v1202 = vadd.f32 %v492, %v1201
        %v1203 = vpop.f32.mrf.mxu0
        %v1204 = vadd.f32 %v488, %v1203
        %v1205 = vpop.f32.mrf.mxu0
        %v1206 = vadd.f32 %v492, %v1205
        %1207 = vmatprep.mubr.bf16.mxu0 0
        %1208 = vmatmul.mubr.bf16.gmra.mxu0 %v463
        %v1209 = vpop.f32.mrf.mxu0
        %v1210 = vadd.f32 %v488, %v1209
        %v1211 = vpop.f32.mrf.mxu0
        %v1212 = vadd.f32 %v492, %v1211
        %v1213 = vpop.f32.mrf.mxu0
        %v1214 = vadd.f32 %v488, %v1213
        %v1215 = vpop.f32.mrf.mxu0
        %v1216 = vadd.f32 %v492, %v1215
        %1217 = vmatprep.mubr.bf16.mxu0 0
        %1218 = vmatmul.mubr.bf16.gmra.mxu0 %v464
        %v1219 = vpop.f32.mrf.mxu0
        %v1220 = vadd.f32 %v488, %v1219
        %v1221 = vpop.f32.mrf.mxu0
        %v1222 = vadd.f32 %v492, %v1221
        %v1223 = vpop.f32.mrf.mxu0
        %v1224 = vadd.f32 %v488, %v1223
        %v1225 = vpop.f32.mrf.mxu0
        %v1226 = vadd.f32 %v492, %v1225
        %1227 = vmatprep.mubr.bf16.mxu0 0
        %1228 = vmatmul.mubr.bf16.gmra.mxu0 %v465
        %v1229 = vpop.f32.mrf.mxu0
        %v1230 = vadd.f32 %v488, %v1229
        %v1231 = vpop.f32.mrf.mxu0
        %v1232 = vadd.f32 %v492, %v1231
        %v1233 = vpop.f32.mrf.mxu0
        %v1234 = vadd.f32 %v488, %v1233
        %v1235 = vpop.f32.mrf.mxu0
        %v1236 = vadd.f32 %v492, %v1235
        %1237 = vmatprep.mubr.bf16.mxu0 0
        %1238 = vmatmul.mubr.bf16.gmra.mxu0 %v466
        %v1239 = vpop.f32.mrf.mxu0
        %v1240 = vadd.f32 %v488, %v1239
        %v1241 = vpop.f32.mrf.mxu0
        %v1242 = vadd.f32 %v492, %v1241
        %v1243 = vpop.f32.mrf.mxu0
        %v1244 = vadd.f32 %v488, %v1243
        %v1245 = vpop.f32.mrf.mxu0
        %v1246 = vadd.f32 %v492, %v1245
        %1247 = vdwg.mxu0
        %v1248 = vmax.f32 %v610, 0.0
        %v1249 = vmax.f32 %v612, 0.0
        %v1250 = vmax.f32 %v614, 0.0
        %v1251 = vmax.f32 %v616, 0.0
        %v1252 = vmax.f32 %v620, 0.0
        %v1253 = vmax.f32 %v622, 0.0
        %v1254 = vmax.f32 %v624, 0.0
        %v1255 = vmax.f32 %v626, 0.0
        %v1256 = vmax.f32 %v630, 0.0
        %v1257 = vmax.f32 %v632, 0.0
        %v1258 = vmax.f32 %v634, 0.0
        %v1259 = vmax.f32 %v636, 0.0
        %v1260 = vmax.f32 %v640, 0.0
        %v1261 = vmax.f32 %v642, 0.0
        %v1262 = vmax.f32 %v644, 0.0
        %v1263 = vmax.f32 %v646, 0.0
        %v1264 = vmax.f32 %v650, 0.0
        %v1265 = vmax.f32 %v652, 0.0
        %v1266 = vmax.f32 %v654, 0.0
        %v1267 = vmax.f32 %v656, 0.0
        %v1268 = vmax.f32 %v660, 0.0
        %v1269 = vmax.f32 %v662, 0.0
        %v1270 = vmax.f32 %v664, 0.0
        %v1271 = vmax.f32 %v666, 0.0
        %v1272 = vmax.f32 %v670, 0.0
        %v1273 = vmax.f32 %v672, 0.0
        %v1274 = vmax.f32 %v674, 0.0
        %v1275 = vmax.f32 %v676, 0.0
        %v1276 = vmax.f32 %v680, 0.0
        %v1277 = vmax.f32 %v682, 0.0
        %v1278 = vmax.f32 %v684, 0.0
        %v1279 = vmax.f32 %v686, 0.0
        %v1280 = vmax.f32 %v690, 0.0
        %v1281 = vmax.f32 %v692, 0.0
        %v1282 = vmax.f32 %v694, 0.0
        %v1283 = vmax.f32 %v696, 0.0
        %v1284 = vmax.f32 %v700, 0.0
        %v1285 = vmax.f32 %v702, 0.0
        %v1286 = vmax.f32 %v704, 0.0
        %v1287 = vmax.f32 %v706, 0.0
        %v1288 = vmax.f32 %v710, 0.0
        %v1289 = vmax.f32 %v712, 0.0
        %v1290 = vmax.f32 %v714, 0.0
        %v1291 = vmax.f32 %v716, 0.0
        %v1292 = vmax.f32 %v720, 0.0
        %v1293 = vmax.f32 %v722, 0.0
        %v1294 = vmax.f32 %v724, 0.0
        %v1295 = vmax.f32 %v726, 0.0
        %v1296 = vmax.f32 %v730, 0.0
        %v1297 = vmax.f32 %v732, 0.0
        %v1298 = vmax.f32 %v734, 0.0
        %v1299 = vmax.f32 %v736, 0.0
        %v1300 = vmax.f32 %v740, 0.0
        %v1301 = vmax.f32 %v742, 0.0
        %v1302 = vmax.f32 %v744, 0.0
        %v1303 = vmax.f32 %v746, 0.0
        %v1304 = vmax.f32 %v750, 0.0
        %v1305 = vmax.f32 %v752, 0.0
        %v1306 = vmax.f32 %v754, 0.0
        %v1307 = vmax.f32 %v756, 0.0
        %v1308 = vmax.f32 %v760, 0.0
        %v1309 = vmax.f32 %v762, 0.0
        %v1310 = vmax.f32 %v764, 0.0
        %v1311 = vmax.f32 %v766, 0.0
        %v1312 = vmax.f32 %v770, 0.0
        %v1313 = vmax.f32 %v772, 0.0
        %v1314 = vmax.f32 %v774, 0.0
        %v1315 = vmax.f32 %v776, 0.0
        %v1316 = vmax.f32 %v780, 0.0
        %v1317 = vmax.f32 %v782, 0.0
        %v1318 = vmax.f32 %v784, 0.0
        %v1319 = vmax.f32 %v786, 0.0
        %v1320 = vmax.f32 %v790, 0.0
        %v1321 = vmax.f32 %v792, 0.0
        %v1322 = vmax.f32 %v794, 0.0
        %v1323 = vmax.f32 %v796, 0.0
        %v1324 = vmax.f32 %v800, 0.0
        %v1325 = vmax.f32 %v802, 0.0
        %v1326 = vmax.f32 %v804, 0.0
        %v1327 = vmax.f32 %v806, 0.0
        %v1328 = vmax.f32 %v810, 0.0
        %v1329 = vmax.f32 %v812, 0.0
        %v1330 = vmax.f32 %v814, 0.0
        %v1331 = vmax.f32 %v816, 0.0
        %v1332 = vmax.f32 %v820, 0.0
        %v1333 = vmax.f32 %v822, 0.0
        %v1334 = vmax.f32 %v824, 0.0
        %v1335 = vmax.f32 %v826, 0.0
        %v1336 = vmax.f32 %v830, 0.0
        %v1337 = vmax.f32 %v832, 0.0
        %v1338 = vmax.f32 %v834, 0.0
        %v1339 = vmax.f32 %v836, 0.0
        %v1340 = vmax.f32 %v840, 0.0
        %v1341 = vmax.f32 %v842, 0.0
        %v1342 = vmax.f32 %v844, 0.0
        %v1343 = vmax.f32 %v846, 0.0
        %v1344 = vmax.f32 %v850, 0.0
        %v1345 = vmax.f32 %v852, 0.0
        %v1346 = vmax.f32 %v854, 0.0
        %v1347 = vmax.f32 %v856, 0.0
        %v1348 = vmax.f32 %v860, 0.0
        %v1349 = vmax.f32 %v862, 0.0
        %v1350 = vmax.f32 %v864, 0.0
        %v1351 = vmax.f32 %v866, 0.0
        %v1352 = vmax.f32 %v870, 0.0
        %v1353 = vmax.f32 %v872, 0.0
        %v1354 = vmax.f32 %v874, 0.0
        %v1355 = vmax.f32 %v876, 0.0
        %v1356 = vmax.f32 %v880, 0.0
        %v1357 = vmax.f32 %v882, 0.0
        %v1358 = vmax.f32 %v884, 0.0
        %v1359 = vmax.f32 %v886, 0.0
        %v1360 = vmax.f32 %v890, 0.0
        %v1361 = vmax.f32 %v892, 0.0
        %v1362 = vmax.f32 %v894, 0.0
        %v1363 = vmax.f32 %v896, 0.0
        %v1364 = vmax.f32 %v900, 0.0
        %v1365 = vmax.f32 %v902, 0.0
        %v1366 = vmax.f32 %v904, 0.0
        %v1367 = vmax.f32 %v906, 0.0
        %v1368 = vmax.f32 %v910, 0.0
        %v1369 = vmax.f32 %v912, 0.0
        %v1370 = vmax.f32 %v914, 0.0
        %v1371 = vmax.f32 %v916, 0.0
        %v1372 = vmax.f32 %v920, 0.0
        %v1373 = vmax.f32 %v922, 0.0
        %v1374 = vmax.f32 %v924, 0.0
        %v1375 = vmax.f32 %v926, 0.0
        %v1376 = vmax.f32 %v930, 0.0
        %v1377 = vmax.f32 %v932, 0.0
        %v1378 = vmax.f32 %v934, 0.0
        %v1379 = vmax.f32 %v936, 0.0
        %v1380 = vmax.f32 %v940, 0.0
        %v1381 = vmax.f32 %v942, 0.0
        %v1382 = vmax.f32 %v944, 0.0
        %v1383 = vmax.f32 %v946, 0.0
        %v1384 = vmax.f32 %v950, 0.0
        %v1385 = vmax.f32 %v952, 0.0
        %v1386 = vmax.f32 %v954, 0.0
        %v1387 = vmax.f32 %v956, 0.0
        %v1388 = vmax.f32 %v960, 0.0
        %v1389 = vmax.f32 %v962, 0.0
        %v1390 = vmax.f32 %v964, 0.0
        %v1391 = vmax.f32 %v966, 0.0
        %v1392 = vmax.f32 %v970, 0.0
        %v1393 = vmax.f32 %v972, 0.0
        %v1394 = vmax.f32 %v974, 0.0
        %v1395 = vmax.f32 %v976, 0.0
        %v1396 = vmax.f32 %v980, 0.0
        %v1397 = vmax.f32 %v982, 0.0
        %v1398 = vmax.f32 %v984, 0.0
        %v1399 = vmax.f32 %v986, 0.0
        %v1400 = vmax.f32 %v990, 0.0
        %v1401 = vmax.f32 %v992, 0.0
        %v1402 = vmax.f32 %v994, 0.0
        %v1403 = vmax.f32 %v996, 0.0
        %v1404 = vmax.f32 %v1000, 0.0
        %v1405 = vmax.f32 %v1002, 0.0
        %v1406 = vmax.f32 %v1004, 0.0
        %v1407 = vmax.f32 %v1006, 0.0
        %v1408 = vmax.f32 %v1010, 0.0
        %v1409 = vmax.f32 %v1012, 0.0
        %v1410 = vmax.f32 %v1014, 0.0
        %v1411 = vmax.f32 %v1016, 0.0
        %v1412 = vmax.f32 %v1020, 0.0
        %v1413 = vmax.f32 %v1022, 0.0
        %v1414 = vmax.f32 %v1024, 0.0
        %v1415 = vmax.f32 %v1026, 0.0
        %v1416 = vmax.f32 %v1030, 0.0
        %v1417 = vmax.f32 %v1032, 0.0
        %v1418 = vmax.f32 %v1034, 0.0
        %v1419 = vmax.f32 %v1036, 0.0
        %v1420 = vmax.f32 %v1040, 0.0
        %v1421 = vmax.f32 %v1042, 0.0
        %v1422 = vmax.f32 %v1044, 0.0
        %v1423 = vmax.f32 %v1046, 0.0
        %v1424 = vmax.f32 %v1050, 0.0
        %v1425 = vmax.f32 %v1052, 0.0
        %v1426 = vmax.f32 %v1054, 0.0
        %v1427 = vmax.f32 %v1056, 0.0
        %v1428 = vmax.f32 %v1060, 0.0
        %v1429 = vmax.f32 %v1062, 0.0
        %v1430 = vmax.f32 %v1064, 0.0
        %v1431 = vmax.f32 %v1066, 0.0
        %v1432 = vmax.f32 %v1070, 0.0
        %v1433 = vmax.f32 %v1072, 0.0
        %v1434 = vmax.f32 %v1074, 0.0
        %v1435 = vmax.f32 %v1076, 0.0
        %v1436 = vmax.f32 %v1080, 0.0
        %v1437 = vmax.f32 %v1082, 0.0
        %v1438 = vmax.f32 %v1084, 0.0
        %v1439 = vmax.f32 %v1086, 0.0
        %v1440 = vmax.f32 %v1090, 0.0
        %v1441 = vmax.f32 %v1092, 0.0
        %v1442 = vmax.f32 %v1094, 0.0
        %v1443 = vmax.f32 %v1096, 0.0
        %v1444 = vmax.f32 %v1100, 0.0
        %v1445 = vmax.f32 %v1102, 0.0
        %v1446 = vmax.f32 %v1104, 0.0
        %v1447 = vmax.f32 %v1106, 0.0
        %v1448 = vmax.f32 %v1110, 0.0
        %v1449 = vmax.f32 %v1112, 0.0
        %v1450 = vmax.f32 %v1114, 0.0
        %v1451 = vmax.f32 %v1116, 0.0
        %v1452 = vmax.f32 %v1120, 0.0
        %v1453 = vmax.f32 %v1122, 0.0
        %v1454 = vmax.f32 %v1124, 0.0
        %v1455 = vmax.f32 %v1126, 0.0
        %v1456 = vmax.f32 %v1130, 0.0
        %v1457 = vmax.f32 %v1132, 0.0
        %v1458 = vmax.f32 %v1134, 0.0
        %v1459 = vmax.f32 %v1136, 0.0
        %v1460 = vmax.f32 %v1140, 0.0
        %v1461 = vmax.f32 %v1142, 0.0
        %v1462 = vmax.f32 %v1144, 0.0
        %v1463 = vmax.f32 %v1146, 0.0
        %v1464 = vmax.f32 %v1150, 0.0
        %v1465 = vmax.f32 %v1152, 0.0
        %v1466 = vmax.f32 %v1154, 0.0
        %v1467 = vmax.f32 %v1156, 0.0
        %v1468 = vmax.f32 %v1160, 0.0
        %v1469 = vmax.f32 %v1162, 0.0
        %v1470 = vmax.f32 %v1164, 0.0
        %v1471 = vmax.f32 %v1166, 0.0
        %v1472 = vmax.f32 %v1170, 0.0
        %v1473 = vmax.f32 %v1172, 0.0
        %v1474 = vmax.f32 %v1174, 0.0
        %v1475 = vmax.f32 %v1176, 0.0
        %v1476 = vmax.f32 %v1180, 0.0
        %v1477 = vmax.f32 %v1182, 0.0
        %v1478 = vmax.f32 %v1184, 0.0
        %v1479 = vmax.f32 %v1186, 0.0
        %v1480 = vmax.f32 %v1190, 0.0
        %v1481 = vmax.f32 %v1192, 0.0
        %v1482 = vmax.f32 %v1194, 0.0
        %v1483 = vmax.f32 %v1196, 0.0
        %v1484 = vmax.f32 %v1200, 0.0
        %v1485 = vmax.f32 %v1202, 0.0
        %v1486 = vmax.f32 %v1204, 0.0
        %v1487 = vmax.f32 %v1206, 0.0
        %v1488 = vmax.f32 %v1210, 0.0
        %v1489 = vmax.f32 %v1212, 0.0
        %v1490 = vmax.f32 %v1214, 0.0
        %v1491 = vmax.f32 %v1216, 0.0
        %v1492 = vmax.f32 %v1220, 0.0
        %v1493 = vmax.f32 %v1222, 0.0
        %v1494 = vmax.f32 %v1224, 0.0
        %v1495 = vmax.f32 %v1226, 0.0
        %v1496 = vmax.f32 %v1230, 0.0
        %v1497 = vmax.f32 %v1232, 0.0
        %v1498 = vmax.f32 %v1234, 0.0
        %v1499 = vmax.f32 %v1236, 0.0
        %v1500 = vmax.f32 %v1240, 0.0
        %v1501 = vmax.f32 %v1242, 0.0
        %v1502 = vmax.f32 %v1244, 0.0
        %v1503 = vmax.f32 %v1246, 0.0
        %v1504 = vpack.c.bf16 %v1250, %v1248
        %v1505 = vpack.c.bf16 %v1251, %v1249
        %v1506 = vpack.c.bf16 %v1254, %v1252
        %v1507 = vpack.c.bf16 %v1255, %v1253
        %v1508 = vpack.c.bf16 %v1258, %v1256
        %v1509 = vpack.c.bf16 %v1259, %v1257
        %v1510 = vpack.c.bf16 %v1262, %v1260
        %v1511 = vpack.c.bf16 %v1263, %v1261
        %v1512 = vpack.c.bf16 %v1266, %v1264
        %v1513 = vpack.c.bf16 %v1267, %v1265
        %v1514 = vpack.c.bf16 %v1270, %v1268
        %v1515 = vpack.c.bf16 %v1271, %v1269
        %v1516 = vpack.c.bf16 %v1274, %v1272
        %v1517 = vpack.c.bf16 %v1275, %v1273
        %v1518 = vpack.c.bf16 %v1278, %v1276
        %v1519 = vpack.c.bf16 %v1279, %v1277
        %v1520 = vpack.c.bf16 %v1282, %v1280
        %v1521 = vpack.c.bf16 %v1283, %v1281
        %v1522 = vpack.c.bf16 %v1286, %v1284
        %v1523 = vpack.c.bf16 %v1287, %v1285
        %v1524 = vpack.c.bf16 %v1290, %v1288
        %v1525 = vpack.c.bf16 %v1291, %v1289
        %v1526 = vpack.c.bf16 %v1294, %v1292
        %v1527 = vpack.c.bf16 %v1295, %v1293
        %v1528 = vpack.c.bf16 %v1298, %v1296
        %v1529 = vpack.c.bf16 %v1299, %v1297
        %v1530 = vpack.c.bf16 %v1302, %v1300
        %v1531 = vpack.c.bf16 %v1303, %v1301
        %v1532 = vpack.c.bf16 %v1306, %v1304
        %v1533 = vpack.c.bf16 %v1307, %v1305
        %v1534 = vpack.c.bf16 %v1310, %v1308
        %v1535 = vpack.c.bf16 %v1311, %v1309
        %v1536 = vpack.c.bf16 %v1314, %v1312
        %v1537 = vpack.c.bf16 %v1315, %v1313
        %v1538 = vpack.c.bf16 %v1318, %v1316
        %v1539 = vpack.c.bf16 %v1319, %v1317
        %v1540 = vpack.c.bf16 %v1322, %v1320
        %v1541 = vpack.c.bf16 %v1323, %v1321
        %v1542 = vpack.c.bf16 %v1326, %v1324
        %v1543 = vpack.c.bf16 %v1327, %v1325
        %v1544 = vpack.c.bf16 %v1330, %v1328
        %v1545 = vpack.c.bf16 %v1331, %v1329
        %v1546 = vpack.c.bf16 %v1334, %v1332
        %v1547 = vpack.c.bf16 %v1335, %v1333
        %v1548 = vpack.c.bf16 %v1338, %v1336
        %v1549 = vpack.c.bf16 %v1339, %v1337
        %v1550 = vpack.c.bf16 %v1342, %v1340
        %v1551 = vpack.c.bf16 %v1343, %v1341
        %v1552 = vpack.c.bf16 %v1346, %v1344
        %v1553 = vpack.c.bf16 %v1347, %v1345
        %v1554 = vpack.c.bf16 %v1350, %v1348
        %v1555 = vpack.c.bf16 %v1351, %v1349
        %v1556 = vpack.c.bf16 %v1354, %v1352
        %v1557 = vpack.c.bf16 %v1355, %v1353
        %v1558 = vpack.c.bf16 %v1358, %v1356
        %v1559 = vpack.c.bf16 %v1359, %v1357
        %v1560 = vpack.c.bf16 %v1362, %v1360
        %v1561 = vpack.c.bf16 %v1363, %v1361
        %v1562 = vpack.c.bf16 %v1366, %v1364
        %v1563 = vpack.c.bf16 %v1367, %v1365
        %v1564 = vpack.c.bf16 %v1370, %v1368
        %v1565 = vpack.c.bf16 %v1371, %v1369
        %v1566 = vpack.c.bf16 %v1374, %v1372
        %v1567 = vpack.c.bf16 %v1375, %v1373
        %v1568 = vpack.c.bf16 %v1378, %v1376
        %v1569 = vpack.c.bf16 %v1379, %v1377
        %v1570 = vpack.c.bf16 %v1382, %v1380
        %v1571 = vpack.c.bf16 %v1383, %v1381
        %v1572 = vpack.c.bf16 %v1386, %v1384
        %v1573 = vpack.c.bf16 %v1387, %v1385
        %v1574 = vpack.c.bf16 %v1390, %v1388
        %v1575 = vpack.c.bf16 %v1391, %v1389
        %v1576 = vpack.c.bf16 %v1394, %v1392
        %v1577 = vpack.c.bf16 %v1395, %v1393
        %v1578 = vpack.c.bf16 %v1398, %v1396
        %v1579 = vpack.c.bf16 %v1399, %v1397
        %v1580 = vpack.c.bf16 %v1402, %v1400
        %v1581 = vpack.c.bf16 %v1403, %v1401
        %v1582 = vpack.c.bf16 %v1406, %v1404
        %v1583 = vpack.c.bf16 %v1407, %v1405
        %v1584 = vpack.c.bf16 %v1410, %v1408
        %v1585 = vpack.c.bf16 %v1411, %v1409
        %v1586 = vpack.c.bf16 %v1414, %v1412
        %v1587 = vpack.c.bf16 %v1415, %v1413
        %v1588 = vpack.c.bf16 %v1418, %v1416
        %v1589 = vpack.c.bf16 %v1419, %v1417
        %v1590 = vpack.c.bf16 %v1422, %v1420
        %v1591 = vpack.c.bf16 %v1423, %v1421
        %v1592 = vpack.c.bf16 %v1426, %v1424
        %v1593 = vpack.c.bf16 %v1427, %v1425
        %v1594 = vpack.c.bf16 %v1430, %v1428
        %v1595 = vpack.c.bf16 %v1431, %v1429
        %v1596 = vpack.c.bf16 %v1434, %v1432
        %v1597 = vpack.c.bf16 %v1435, %v1433
        %v1598 = vpack.c.bf16 %v1438, %v1436
        %v1599 = vpack.c.bf16 %v1439, %v1437
        %v1600 = vpack.c.bf16 %v1442, %v1440
        %v1601 = vpack.c.bf16 %v1443, %v1441
        %v1602 = vpack.c.bf16 %v1446, %v1444
        %v1603 = vpack.c.bf16 %v1447, %v1445
        %v1604 = vpack.c.bf16 %v1450, %v1448
        %v1605 = vpack.c.bf16 %v1451, %v1449
        %v1606 = vpack.c.bf16 %v1454, %v1452
        %v1607 = vpack.c.bf16 %v1455, %v1453
        %v1608 = vpack.c.bf16 %v1458, %v1456
        %v1609 = vpack.c.bf16 %v1459, %v1457
        %v1610 = vpack.c.bf16 %v1462, %v1460
        %v1611 = vpack.c.bf16 %v1463, %v1461
        %v1612 = vpack.c.bf16 %v1466, %v1464
        %v1613 = vpack.c.bf16 %v1467, %v1465
        %v1614 = vpack.c.bf16 %v1470, %v1468
        %v1615 = vpack.c.bf16 %v1471, %v1469
        %v1616 = vpack.c.bf16 %v1474, %v1472
        %v1617 = vpack.c.bf16 %v1475, %v1473
        %v1618 = vpack.c.bf16 %v1478, %v1476
        %v1619 = vpack.c.bf16 %v1479, %v1477
        %v1620 = vpack.c.bf16 %v1482, %v1480
        %v1621 = vpack.c.bf16 %v1483, %v1481
        %v1622 = vpack.c.bf16 %v1486, %v1484
        %v1623 = vpack.c.bf16 %v1487, %v1485
        %v1624 = vpack.c.bf16 %v1490, %v1488
        %v1625 = vpack.c.bf16 %v1491, %v1489
        %v1626 = vpack.c.bf16 %v1494, %v1492
        %v1627 = vpack.c.bf16 %v1495, %v1493
        %v1628 = vpack.c.bf16 %v1498, %v1496
        %v1629 = vpack.c.bf16 %v1499, %v1497
        %v1630 = vpack.c.bf16 %v1502, %v1500
        %v1631 = vpack.c.bf16 %v1503, %v1501
        %v1632 = vld [vmem:[#allocation7] sm:$0xf]
        %v1633 = vld [vmem:[#allocation7 + $0x4] sm:$0xf]
        %v1634 = vld [vmem:[#allocation7 + $0x8] sm:$0xf]
        %v1635 = vld [vmem:[#allocation7 + $0xc] sm:$0xf]
        %v1636 = vld [vmem:[#allocation7 + $0x10] sm:$0xf]
        %v1637 = vld [vmem:[#allocation7 + $0x14] sm:$0xf]
        %v1638 = vld [vmem:[#allocation7 + $0x18] sm:$0xf]
        %v1639 = vld [vmem:[#allocation7 + $0x1c] sm:$0xf]
        %v1640 = vld [vmem:[#allocation7 + $0x20] sm:$0xf]
        %v1641 = vld [vmem:[#allocation7 + $0x24] sm:$0xf]
        %v1642 = vld [vmem:[#allocation7 + $0x28] sm:$0xf]
        %v1643 = vld [vmem:[#allocation7 + $0x2c] sm:$0xf]
        %v1644 = vld [vmem:[#allocation7 + $0x30] sm:$0xf]
        %v1645 = vld [vmem:[#allocation7 + $0x34] sm:$0xf]
        %v1646 = vld [vmem:[#allocation7 + $0x38] sm:$0xf]
        %v1647 = vld [vmem:[#allocation7 + $0x3c] sm:$0xf]
        %v1648 = vld [vmem:[#allocation7 + $0x40] sm:$0xf]
        %v1649 = vld [vmem:[#allocation7 + $0x44] sm:$0xf]
        %v1650 = vld [vmem:[#allocation7 + $0x48] sm:$0xf]
        %v1651 = vld [vmem:[#allocation7 + $0x4c] sm:$0xf]
        %v1652 = vld [vmem:[#allocation7 + $0x50] sm:$0xf]
        %v1653 = vld [vmem:[#allocation7 + $0x54] sm:$0xf]
        %v1654 = vld [vmem:[#allocation7 + $0x58] sm:$0xf]
        %v1655 = vld [vmem:[#allocation7 + $0x5c] sm:$0xf]
        %v1656 = vld [vmem:[#allocation7 + $0x60] sm:$0xf]
        %v1657 = vld [vmem:[#allocation7 + $0x64] sm:$0xf]
        %v1658 = vld [vmem:[#allocation7 + $0x68] sm:$0xf]
        %v1659 = vld [vmem:[#allocation7 + $0x6c] sm:$0xf]
        %v1660 = vld [vmem:[#allocation7 + $0x70] sm:$0xf]
        %v1661 = vld [vmem:[#allocation7 + $0x74] sm:$0xf]
        %v1662 = vld [vmem:[#allocation7 + $0x78] sm:$0xf]
        %v1663 = vld [vmem:[#allocation7 + $0x7c] sm:$0xf]
        %v1664 = vld [vmem:[%s4] sm:$0x1]
        %v1666 = vlaneseq
        %v1667 = vshrl.u32 %v1666, 7
        %v1668 = vsub.s32 0, %v1667
        %v1669 = vrot.slane %v1664, %v1668
        %v1703 = vunpack.c.l.b16 %v1632
        %v1704 = vunpack.c.l.b16 %v1633
        %v1705 = vunpack.c.l.b16 %v1634
        %v1706 = vunpack.c.l.b16 %v1635
        %v1707 = vunpack.c.l.b16 %v1636
        %v1708 = vunpack.c.l.b16 %v1637
        %v1709 = vunpack.c.l.b16 %v1638
        %v1710 = vunpack.c.l.b16 %v1639
        %v1711 = vunpack.c.l.b16 %v1640
        %v1712 = vunpack.c.l.b16 %v1641
        %v1713 = vunpack.c.l.b16 %v1642
        %v1714 = vunpack.c.l.b16 %v1643
        %v1715 = vunpack.c.l.b16 %v1644
        %v1716 = vunpack.c.l.b16 %v1645
        %v1717 = vunpack.c.l.b16 %v1646
        %v1718 = vunpack.c.l.b16 %v1647
        %v1719 = vunpack.c.l.b16 %v1648
        %v1720 = vunpack.c.l.b16 %v1649
        %v1721 = vunpack.c.l.b16 %v1650
        %v1722 = vunpack.c.l.b16 %v1651
        %v1723 = vunpack.c.l.b16 %v1652
        %v1724 = vunpack.c.l.b16 %v1653
        %v1725 = vunpack.c.l.b16 %v1654
        %v1726 = vunpack.c.l.b16 %v1655
        %v1727 = vunpack.c.l.b16 %v1656
        %v1728 = vunpack.c.l.b16 %v1657
        %v1729 = vunpack.c.l.b16 %v1658
        %v1730 = vunpack.c.l.b16 %v1659
        %v1731 = vunpack.c.l.b16 %v1660
        %v1732 = vunpack.c.l.b16 %v1661
        %v1733 = vunpack.c.l.b16 %v1662
        %v1734 = vunpack.c.l.b16 %v1663
        %v1735 = vpack.c.b16 %v1704, %v1703
        %v1736 = vpack.c.b16 %v1706, %v1705
        %v1737 = vpack.c.b16 %v1708, %v1707
        %v1738 = vpack.c.b16 %v1710, %v1709
        %v1739 = vpack.c.b16 %v1712, %v1711
        %v1740 = vpack.c.b16 %v1714, %v1713
        %v1741 = vpack.c.b16 %v1716, %v1715
        %v1742 = vpack.c.b16 %v1718, %v1717
        %v1743 = vpack.c.b16 %v1720, %v1719
        %v1744 = vpack.c.b16 %v1722, %v1721
        %v1745 = vpack.c.b16 %v1724, %v1723
        %v1746 = vpack.c.b16 %v1726, %v1725
        %v1747 = vpack.c.b16 %v1728, %v1727
        %v1748 = vpack.c.b16 %v1730, %v1729
        %v1749 = vpack.c.b16 %v1732, %v1731
        %v1750 = vpack.c.b16 %v1734, %v1733
        %1767 = vmatprep.subr.bf16.mxu0 0
        %1768 = vmatpush1.bf16.msra.mxu0 %v1742
        %1769 = vmatprep.subr.bf16.mxu0 0
        %1770 = vmatpush1.bf16.msra.mxu0 %v1741
        %1771 = vmatprep.subr.bf16.mxu0 0
        %1772 = vmatpush1.bf16.msra.mxu0 %v1740
        %1773 = vmatprep.subr.bf16.mxu0 0
        %1774 = vmatpush1.bf16.msra.mxu0 %v1739
        %1775 = vmatprep.subr.bf16.mxu0 0
        %1776 = vmatpush1.bf16.msra.mxu0 %v1738
        %1777 = vmatprep.subr.bf16.mxu0 0
        %1778 = vmatpush1.bf16.msra.mxu0 %v1737
        %1779 = vmatprep.subr.bf16.mxu0 0
        %1780 = vmatpush1.bf16.msra.mxu0 %v1736
        %1781 = vmatprep.subr.bf16.mxu0 0
        %1782 = vmatpush1.bf16.msra.mxu0 %v1735
        %1783 = vmatprep.subr.bf16.mxu0 0
        %1784 = vmatpush2.bf16.msra.mxu0 %v1750
        %1785 = vmatprep.subr.bf16.mxu0 0
        %1786 = vmatpush2.bf16.msra.mxu0 %v1749
        %1787 = vmatprep.subr.bf16.mxu0 0
        %1788 = vmatpush2.bf16.msra.mxu0 %v1748
        %1789 = vmatprep.subr.bf16.mxu0 0
        %1790 = vmatpush2.bf16.msra.mxu0 %v1747
        %1791 = vmatprep.subr.bf16.mxu0 0
        %1792 = vmatpush2.bf16.msra.mxu0 %v1746
        %1793 = vmatprep.subr.bf16.mxu0 0
        %1794 = vmatpush2.bf16.msra.mxu0 %v1745
        %1795 = vmatprep.subr.bf16.mxu0 0
        %1796 = vmatpush2.bf16.msra.mxu0 %v1744
        %1797 = vmatprep.subr.bf16.mxu0 0
        %1798 = vmatpush2.bf16.msra.mxu0 %v1743
        %1799 = vmatprep.mubr.bf16.mxu0 %v1505
        %1800 = vmatmul.mubr.bf16.gmra.mxu0 %v1504
        %v1801 = vpop.f32.mrf.mxu0
        %v1802 = vadd.f32 %v1669, %v1801
        %v1803 = vpop.f32.mrf.mxu0
        %v1804 = vpop.f32.mrf.mxu0
        %v1805 = vadd.f32 %v1669, %v1804
        %v1806 = vpop.f32.mrf.mxu0
        %1807 = vmatprep.mubr.bf16.mxu0 %v1507
        %1808 = vmatmul.mubr.bf16.gmra.mxu0 %v1506
        %v1809 = vpop.f32.mrf.mxu0
        %v1810 = vadd.f32 %v1669, %v1809
        %v1811 = vpop.f32.mrf.mxu0
        %v1812 = vpop.f32.mrf.mxu0
        %v1813 = vadd.f32 %v1669, %v1812
        %v1814 = vpop.f32.mrf.mxu0
        %1815 = vmatprep.mubr.bf16.mxu0 %v1509
        %1816 = vmatmul.mubr.bf16.gmra.mxu0 %v1508
        %v1817 = vpop.f32.mrf.mxu0
        %v1818 = vadd.f32 %v1669, %v1817
        %v1819 = vpop.f32.mrf.mxu0
        %v1820 = vpop.f32.mrf.mxu0
        %v1821 = vadd.f32 %v1669, %v1820
        %v1822 = vpop.f32.mrf.mxu0
        %1823 = vmatprep.mubr.bf16.mxu0 %v1511
        %1824 = vmatmul.mubr.bf16.gmra.mxu0 %v1510
        %v1825 = vpop.f32.mrf.mxu0
        %v1826 = vadd.f32 %v1669, %v1825
        %v1827 = vpop.f32.mrf.mxu0
        %v1828 = vpop.f32.mrf.mxu0
        %v1829 = vadd.f32 %v1669, %v1828
        %v1830 = vpop.f32.mrf.mxu0
        %1831 = vmatprep.mubr.bf16.mxu0 %v1513
        %1832 = vmatmul.mubr.bf16.gmra.mxu0 %v1512
        %v1833 = vpop.f32.mrf.mxu0
        %v1834 = vadd.f32 %v1669, %v1833
        %v1835 = vpop.f32.mrf.mxu0
        %v1836 = vpop.f32.mrf.mxu0
        %v1837 = vadd.f32 %v1669, %v1836
        %v1838 = vpop.f32.mrf.mxu0
        %1839 = vmatprep.mubr.bf16.mxu0 %v1515
        %1840 = vmatmul.mubr.bf16.gmra.mxu0 %v1514
        %v1841 = vpop.f32.mrf.mxu0
        %v1842 = vadd.f32 %v1669, %v1841
        %v1843 = vpop.f32.mrf.mxu0
        %v1844 = vpop.f32.mrf.mxu0
        %v1845 = vadd.f32 %v1669, %v1844
        %v1846 = vpop.f32.mrf.mxu0
        %1847 = vmatprep.mubr.bf16.mxu0 %v1517
        %1848 = vmatmul.mubr.bf16.gmra.mxu0 %v1516
        %v1849 = vpop.f32.mrf.mxu0
        %v1850 = vadd.f32 %v1669, %v1849
        %v1851 = vpop.f32.mrf.mxu0
        %v1852 = vpop.f32.mrf.mxu0
        %v1853 = vadd.f32 %v1669, %v1852
        %v1854 = vpop.f32.mrf.mxu0
        %1855 = vmatprep.mubr.bf16.mxu0 %v1519
        %1856 = vmatmul.mubr.bf16.gmra.mxu0 %v1518
        %v1857 = vpop.f32.mrf.mxu0
        %v1858 = vadd.f32 %v1669, %v1857
        %v1859 = vpop.f32.mrf.mxu0
        %v1860 = vpop.f32.mrf.mxu0
        %v1861 = vadd.f32 %v1669, %v1860
        %v1862 = vpop.f32.mrf.mxu0
        %1863 = vmatprep.mubr.bf16.mxu0 %v1521
        %1864 = vmatmul.mubr.bf16.gmra.mxu0 %v1520
        %v1865 = vpop.f32.mrf.mxu0
        %v1866 = vadd.f32 %v1669, %v1865
        %v1867 = vpop.f32.mrf.mxu0
        %v1868 = vpop.f32.mrf.mxu0
        %v1869 = vadd.f32 %v1669, %v1868
        %v1870 = vpop.f32.mrf.mxu0
        %1871 = vmatprep.mubr.bf16.mxu0 %v1523
        %1872 = vmatmul.mubr.bf16.gmra.mxu0 %v1522
        %v1873 = vpop.f32.mrf.mxu0
        %v1874 = vadd.f32 %v1669, %v1873
        %v1875 = vpop.f32.mrf.mxu0
        %v1876 = vpop.f32.mrf.mxu0
        %v1877 = vadd.f32 %v1669, %v1876
        %v1878 = vpop.f32.mrf.mxu0
        %1879 = vmatprep.mubr.bf16.mxu0 %v1525
        %1880 = vmatmul.mubr.bf16.gmra.mxu0 %v1524
        %v1881 = vpop.f32.mrf.mxu0
        %v1882 = vadd.f32 %v1669, %v1881
        %v1883 = vpop.f32.mrf.mxu0
        %v1884 = vpop.f32.mrf.mxu0
        %v1885 = vadd.f32 %v1669, %v1884
        %v1886 = vpop.f32.mrf.mxu0
        %1887 = vmatprep.mubr.bf16.mxu0 %v1527
        %1888 = vmatmul.mubr.bf16.gmra.mxu0 %v1526
        %v1889 = vpop.f32.mrf.mxu0
        %v1890 = vadd.f32 %v1669, %v1889
        %v1891 = vpop.f32.mrf.mxu0
        %v1892 = vpop.f32.mrf.mxu0
        %v1893 = vadd.f32 %v1669, %v1892
        %v1894 = vpop.f32.mrf.mxu0
        %1895 = vmatprep.mubr.bf16.mxu0 %v1529
        %1896 = vmatmul.mubr.bf16.gmra.mxu0 %v1528
        %v1897 = vpop.f32.mrf.mxu0
        %v1898 = vadd.f32 %v1669, %v1897
        %v1899 = vpop.f32.mrf.mxu0
        %v1900 = vpop.f32.mrf.mxu0
        %v1901 = vadd.f32 %v1669, %v1900
        %v1902 = vpop.f32.mrf.mxu0
        %1903 = vmatprep.mubr.bf16.mxu0 %v1531
        %1904 = vmatmul.mubr.bf16.gmra.mxu0 %v1530
        %v1905 = vpop.f32.mrf.mxu0
        %v1906 = vadd.f32 %v1669, %v1905
        %v1907 = vpop.f32.mrf.mxu0
        %v1908 = vpop.f32.mrf.mxu0
        %v1909 = vadd.f32 %v1669, %v1908
        %v1910 = vpop.f32.mrf.mxu0
        %1911 = vmatprep.mubr.bf16.mxu0 %v1533
        %1912 = vmatmul.mubr.bf16.gmra.mxu0 %v1532
        %v1913 = vpop.f32.mrf.mxu0
        %v1914 = vadd.f32 %v1669, %v1913
        %v1915 = vpop.f32.mrf.mxu0
        %v1916 = vpop.f32.mrf.mxu0
        %v1917 = vadd.f32 %v1669, %v1916
        %v1918 = vpop.f32.mrf.mxu0
        %1919 = vmatprep.mubr.bf16.mxu0 %v1535
        %1920 = vmatmul.mubr.bf16.gmra.mxu0 %v1534
        %v1921 = vpop.f32.mrf.mxu0
        %v1922 = vadd.f32 %v1669, %v1921
        %v1923 = vpop.f32.mrf.mxu0
        %v1924 = vpop.f32.mrf.mxu0
        %v1925 = vadd.f32 %v1669, %v1924
        %v1926 = vpop.f32.mrf.mxu0
        %1927 = vmatprep.mubr.bf16.mxu0 %v1537
        %1928 = vmatmul.mubr.bf16.gmra.mxu0 %v1536
        %v1929 = vpop.f32.mrf.mxu0
        %v1930 = vadd.f32 %v1669, %v1929
        %v1931 = vpop.f32.mrf.mxu0
        %v1932 = vpop.f32.mrf.mxu0
        %v1933 = vadd.f32 %v1669, %v1932
        %v1934 = vpop.f32.mrf.mxu0
        %1935 = vmatprep.mubr.bf16.mxu0 %v1539
        %1936 = vmatmul.mubr.bf16.gmra.mxu0 %v1538
        %v1937 = vpop.f32.mrf.mxu0
        %v1938 = vadd.f32 %v1669, %v1937
        %v1939 = vpop.f32.mrf.mxu0
        %v1940 = vpop.f32.mrf.mxu0
        %v1941 = vadd.f32 %v1669, %v1940
        %v1942 = vpop.f32.mrf.mxu0
        %1943 = vmatprep.mubr.bf16.mxu0 %v1541
        %1944 = vmatmul.mubr.bf16.gmra.mxu0 %v1540
        %v1945 = vpop.f32.mrf.mxu0
        %v1946 = vadd.f32 %v1669, %v1945
        %v1947 = vpop.f32.mrf.mxu0
        %v1948 = vpop.f32.mrf.mxu0
        %v1949 = vadd.f32 %v1669, %v1948
        %v1950 = vpop.f32.mrf.mxu0
        %1951 = vmatprep.mubr.bf16.mxu0 %v1543
        %1952 = vmatmul.mubr.bf16.gmra.mxu0 %v1542
        %v1953 = vpop.f32.mrf.mxu0
        %v1954 = vadd.f32 %v1669, %v1953
        %v1955 = vpop.f32.mrf.mxu0
        %v1956 = vpop.f32.mrf.mxu0
        %v1957 = vadd.f32 %v1669, %v1956
        %v1958 = vpop.f32.mrf.mxu0
        %1959 = vmatprep.mubr.bf16.mxu0 %v1545
        %1960 = vmatmul.mubr.bf16.gmra.mxu0 %v1544
        %v1961 = vpop.f32.mrf.mxu0
        %v1962 = vadd.f32 %v1669, %v1961
        %v1963 = vpop.f32.mrf.mxu0
        %v1964 = vpop.f32.mrf.mxu0
        %v1965 = vadd.f32 %v1669, %v1964
        %v1966 = vpop.f32.mrf.mxu0
        %1967 = vmatprep.mubr.bf16.mxu0 %v1547
        %1968 = vmatmul.mubr.bf16.gmra.mxu0 %v1546
        %v1969 = vpop.f32.mrf.mxu0
        %v1970 = vadd.f32 %v1669, %v1969
        %v1971 = vpop.f32.mrf.mxu0
        %v1972 = vpop.f32.mrf.mxu0
        %v1973 = vadd.f32 %v1669, %v1972
        %v1974 = vpop.f32.mrf.mxu0
        %1975 = vmatprep.mubr.bf16.mxu0 %v1549
        %1976 = vmatmul.mubr.bf16.gmra.mxu0 %v1548
        %v1977 = vpop.f32.mrf.mxu0
        %v1978 = vadd.f32 %v1669, %v1977
        %v1979 = vpop.f32.mrf.mxu0
        %v1980 = vpop.f32.mrf.mxu0
        %v1981 = vadd.f32 %v1669, %v1980
        %v1982 = vpop.f32.mrf.mxu0
        %1983 = vmatprep.mubr.bf16.mxu0 %v1551
        %1984 = vmatmul.mubr.bf16.gmra.mxu0 %v1550
        %v1985 = vpop.f32.mrf.mxu0
        %v1986 = vadd.f32 %v1669, %v1985
        %v1987 = vpop.f32.mrf.mxu0
        %v1988 = vpop.f32.mrf.mxu0
        %v1989 = vadd.f32 %v1669, %v1988
        %v1990 = vpop.f32.mrf.mxu0
        %1991 = vmatprep.mubr.bf16.mxu0 %v1553
        %1992 = vmatmul.mubr.bf16.gmra.mxu0 %v1552
        %v1993 = vpop.f32.mrf.mxu0
        %v1994 = vadd.f32 %v1669, %v1993
        %v1995 = vpop.f32.mrf.mxu0
        %v1996 = vpop.f32.mrf.mxu0
        %v1997 = vadd.f32 %v1669, %v1996
        %v1998 = vpop.f32.mrf.mxu0
        %1999 = vmatprep.mubr.bf16.mxu0 %v1555
        %2000 = vmatmul.mubr.bf16.gmra.mxu0 %v1554
        %v2001 = vpop.f32.mrf.mxu0
        %v2002 = vadd.f32 %v1669, %v2001
        %v2003 = vpop.f32.mrf.mxu0
        %v2004 = vpop.f32.mrf.mxu0
        %v2005 = vadd.f32 %v1669, %v2004
        %v2006 = vpop.f32.mrf.mxu0
        %2007 = vmatprep.mubr.bf16.mxu0 %v1557
        %2008 = vmatmul.mubr.bf16.gmra.mxu0 %v1556
        %v2009 = vpop.f32.mrf.mxu0
        %v2010 = vadd.f32 %v1669, %v2009
        %v2011 = vpop.f32.mrf.mxu0
        %v2012 = vpop.f32.mrf.mxu0
        %v2013 = vadd.f32 %v1669, %v2012
        %v2014 = vpop.f32.mrf.mxu0
        %2015 = vmatprep.mubr.bf16.mxu0 %v1559
        %2016 = vmatmul.mubr.bf16.gmra.mxu0 %v1558
        %v2017 = vpop.f32.mrf.mxu0
        %v2018 = vadd.f32 %v1669, %v2017
        %v2019 = vpop.f32.mrf.mxu0
        %v2020 = vpop.f32.mrf.mxu0
        %v2021 = vadd.f32 %v1669, %v2020
        %v2022 = vpop.f32.mrf.mxu0
        %2023 = vmatprep.mubr.bf16.mxu0 %v1561
        %2024 = vmatmul.mubr.bf16.gmra.mxu0 %v1560
        %v2025 = vpop.f32.mrf.mxu0
        %v2026 = vadd.f32 %v1669, %v2025
        %v2027 = vpop.f32.mrf.mxu0
        %v2028 = vpop.f32.mrf.mxu0
        %v2029 = vadd.f32 %v1669, %v2028
        %v2030 = vpop.f32.mrf.mxu0
        %2031 = vmatprep.mubr.bf16.mxu0 %v1563
        %2032 = vmatmul.mubr.bf16.gmra.mxu0 %v1562
        %v2033 = vpop.f32.mrf.mxu0
        %v2034 = vadd.f32 %v1669, %v2033
        %v2035 = vpop.f32.mrf.mxu0
        %v2036 = vpop.f32.mrf.mxu0
        %v2037 = vadd.f32 %v1669, %v2036
        %v2038 = vpop.f32.mrf.mxu0
        %2039 = vmatprep.mubr.bf16.mxu0 %v1565
        %2040 = vmatmul.mubr.bf16.gmra.mxu0 %v1564
        %v2041 = vpop.f32.mrf.mxu0
        %v2042 = vadd.f32 %v1669, %v2041
        %v2043 = vpop.f32.mrf.mxu0
        %v2044 = vpop.f32.mrf.mxu0
        %v2045 = vadd.f32 %v1669, %v2044
        %v2046 = vpop.f32.mrf.mxu0
        %2047 = vmatprep.mubr.bf16.mxu0 %v1567
        %2048 = vmatmul.mubr.bf16.gmra.mxu0 %v1566
        %v2049 = vpop.f32.mrf.mxu0
        %v2050 = vadd.f32 %v1669, %v2049
        %v2051 = vpop.f32.mrf.mxu0
        %v2052 = vpop.f32.mrf.mxu0
        %v2053 = vadd.f32 %v1669, %v2052
        %v2054 = vpop.f32.mrf.mxu0
        %2055 = vmatprep.mubr.bf16.mxu0 %v1569
        %2056 = vmatmul.mubr.bf16.gmra.mxu0 %v1568
        %v2057 = vpop.f32.mrf.mxu0
        %v2058 = vadd.f32 %v1669, %v2057
        %v2059 = vpop.f32.mrf.mxu0
        %v2060 = vpop.f32.mrf.mxu0
        %v2061 = vadd.f32 %v1669, %v2060
        %v2062 = vpop.f32.mrf.mxu0
        %2063 = vmatprep.mubr.bf16.mxu0 %v1571
        %2064 = vmatmul.mubr.bf16.gmra.mxu0 %v1570
        %v2065 = vpop.f32.mrf.mxu0
        %v2066 = vadd.f32 %v1669, %v2065
        %v2067 = vpop.f32.mrf.mxu0
        %v2068 = vpop.f32.mrf.mxu0
        %v2069 = vadd.f32 %v1669, %v2068
        %v2070 = vpop.f32.mrf.mxu0
        %2071 = vmatprep.mubr.bf16.mxu0 %v1573
        %2072 = vmatmul.mubr.bf16.gmra.mxu0 %v1572
        %v2073 = vpop.f32.mrf.mxu0
        %v2074 = vadd.f32 %v1669, %v2073
        %v2075 = vpop.f32.mrf.mxu0
        %v2076 = vpop.f32.mrf.mxu0
        %v2077 = vadd.f32 %v1669, %v2076
        %v2078 = vpop.f32.mrf.mxu0
        %2079 = vmatprep.mubr.bf16.mxu0 %v1575
        %2080 = vmatmul.mubr.bf16.gmra.mxu0 %v1574
        %v2081 = vpop.f32.mrf.mxu0
        %v2082 = vadd.f32 %v1669, %v2081
        %v2083 = vpop.f32.mrf.mxu0
        %v2084 = vpop.f32.mrf.mxu0
        %v2085 = vadd.f32 %v1669, %v2084
        %v2086 = vpop.f32.mrf.mxu0
        %2087 = vmatprep.mubr.bf16.mxu0 %v1577
        %2088 = vmatmul.mubr.bf16.gmra.mxu0 %v1576
        %v2089 = vpop.f32.mrf.mxu0
        %v2090 = vadd.f32 %v1669, %v2089
        %v2091 = vpop.f32.mrf.mxu0
        %v2092 = vpop.f32.mrf.mxu0
        %v2093 = vadd.f32 %v1669, %v2092
        %v2094 = vpop.f32.mrf.mxu0
        %2095 = vmatprep.mubr.bf16.mxu0 %v1579
        %2096 = vmatmul.mubr.bf16.gmra.mxu0 %v1578
        %v2097 = vpop.f32.mrf.mxu0
        %v2098 = vadd.f32 %v1669, %v2097
        %v2099 = vpop.f32.mrf.mxu0
        %v2100 = vpop.f32.mrf.mxu0
        %v2101 = vadd.f32 %v1669, %v2100
        %v2102 = vpop.f32.mrf.mxu0
        %2103 = vmatprep.mubr.bf16.mxu0 %v1581
        %2104 = vmatmul.mubr.bf16.gmra.mxu0 %v1580
        %v2105 = vpop.f32.mrf.mxu0
        %v2106 = vadd.f32 %v1669, %v2105
        %v2107 = vpop.f32.mrf.mxu0
        %v2108 = vpop.f32.mrf.mxu0
        %v2109 = vadd.f32 %v1669, %v2108
        %v2110 = vpop.f32.mrf.mxu0
        %2111 = vmatprep.mubr.bf16.mxu0 %v1583
        %2112 = vmatmul.mubr.bf16.gmra.mxu0 %v1582
        %v2113 = vpop.f32.mrf.mxu0
        %v2114 = vadd.f32 %v1669, %v2113
        %v2115 = vpop.f32.mrf.mxu0
        %v2116 = vpop.f32.mrf.mxu0
        %v2117 = vadd.f32 %v1669, %v2116
        %v2118 = vpop.f32.mrf.mxu0
        %2119 = vmatprep.mubr.bf16.mxu0 %v1585
        %2120 = vmatmul.mubr.bf16.gmra.mxu0 %v1584
        %v2121 = vpop.f32.mrf.mxu0
        %v2122 = vadd.f32 %v1669, %v2121
        %v2123 = vpop.f32.mrf.mxu0
        %v2124 = vpop.f32.mrf.mxu0
        %v2125 = vadd.f32 %v1669, %v2124
        %v2126 = vpop.f32.mrf.mxu0
        %2127 = vmatprep.mubr.bf16.mxu0 %v1587
        %2128 = vmatmul.mubr.bf16.gmra.mxu0 %v1586
        %v2129 = vpop.f32.mrf.mxu0
        %v2130 = vadd.f32 %v1669, %v2129
        %v2131 = vpop.f32.mrf.mxu0
        %v2132 = vpop.f32.mrf.mxu0
        %v2133 = vadd.f32 %v1669, %v2132
        %v2134 = vpop.f32.mrf.mxu0
        %2135 = vmatprep.mubr.bf16.mxu0 %v1589
        %2136 = vmatmul.mubr.bf16.gmra.mxu0 %v1588
        %v2137 = vpop.f32.mrf.mxu0
        %v2138 = vadd.f32 %v1669, %v2137
        %v2139 = vpop.f32.mrf.mxu0
        %v2140 = vpop.f32.mrf.mxu0
        %v2141 = vadd.f32 %v1669, %v2140
        %v2142 = vpop.f32.mrf.mxu0
        %2143 = vmatprep.mubr.bf16.mxu0 %v1591
        %2144 = vmatmul.mubr.bf16.gmra.mxu0 %v1590
        %v2145 = vpop.f32.mrf.mxu0
        %v2146 = vadd.f32 %v1669, %v2145
        %v2147 = vpop.f32.mrf.mxu0
        %v2148 = vpop.f32.mrf.mxu0
        %v2149 = vadd.f32 %v1669, %v2148
        %v2150 = vpop.f32.mrf.mxu0
        %2151 = vmatprep.mubr.bf16.mxu0 %v1593
        %2152 = vmatmul.mubr.bf16.gmra.mxu0 %v1592
        %v2153 = vpop.f32.mrf.mxu0
        %v2154 = vadd.f32 %v1669, %v2153
        %v2155 = vpop.f32.mrf.mxu0
        %v2156 = vpop.f32.mrf.mxu0
        %v2157 = vadd.f32 %v1669, %v2156
        %v2158 = vpop.f32.mrf.mxu0
        %2159 = vmatprep.mubr.bf16.mxu0 %v1595
        %2160 = vmatmul.mubr.bf16.gmra.mxu0 %v1594
        %v2161 = vpop.f32.mrf.mxu0
        %v2162 = vadd.f32 %v1669, %v2161
        %v2163 = vpop.f32.mrf.mxu0
        %v2164 = vpop.f32.mrf.mxu0
        %v2165 = vadd.f32 %v1669, %v2164
        %v2166 = vpop.f32.mrf.mxu0
        %2167 = vmatprep.mubr.bf16.mxu0 %v1597
        %2168 = vmatmul.mubr.bf16.gmra.mxu0 %v1596
        %v2169 = vpop.f32.mrf.mxu0
        %v2170 = vadd.f32 %v1669, %v2169
        %v2171 = vpop.f32.mrf.mxu0
        %v2172 = vpop.f32.mrf.mxu0
        %v2173 = vadd.f32 %v1669, %v2172
        %v2174 = vpop.f32.mrf.mxu0
        %2175 = vmatprep.mubr.bf16.mxu0 %v1599
        %2176 = vmatmul.mubr.bf16.gmra.mxu0 %v1598
        %v2177 = vpop.f32.mrf.mxu0
        %v2178 = vadd.f32 %v1669, %v2177
        %v2179 = vpop.f32.mrf.mxu0
        %v2180 = vpop.f32.mrf.mxu0
        %v2181 = vadd.f32 %v1669, %v2180
        %v2182 = vpop.f32.mrf.mxu0
        %2183 = vmatprep.mubr.bf16.mxu0 %v1601
        %2184 = vmatmul.mubr.bf16.gmra.mxu0 %v1600
        %v2185 = vpop.f32.mrf.mxu0
        %v2186 = vadd.f32 %v1669, %v2185
        %v2187 = vpop.f32.mrf.mxu0
        %v2188 = vpop.f32.mrf.mxu0
        %v2189 = vadd.f32 %v1669, %v2188
        %v2190 = vpop.f32.mrf.mxu0
        %2191 = vmatprep.mubr.bf16.mxu0 %v1603
        %2192 = vmatmul.mubr.bf16.gmra.mxu0 %v1602
        %v2193 = vpop.f32.mrf.mxu0
        %v2194 = vadd.f32 %v1669, %v2193
        %v2195 = vpop.f32.mrf.mxu0
        %v2196 = vpop.f32.mrf.mxu0
        %v2197 = vadd.f32 %v1669, %v2196
        %v2198 = vpop.f32.mrf.mxu0
        %2199 = vmatprep.mubr.bf16.mxu0 %v1605
        %2200 = vmatmul.mubr.bf16.gmra.mxu0 %v1604
        %v2201 = vpop.f32.mrf.mxu0
        %v2202 = vadd.f32 %v1669, %v2201
        %v2203 = vpop.f32.mrf.mxu0
        %v2204 = vpop.f32.mrf.mxu0
        %v2205 = vadd.f32 %v1669, %v2204
        %v2206 = vpop.f32.mrf.mxu0
        %2207 = vmatprep.mubr.bf16.mxu0 %v1607
        %2208 = vmatmul.mubr.bf16.gmra.mxu0 %v1606
        %v2209 = vpop.f32.mrf.mxu0
        %v2210 = vadd.f32 %v1669, %v2209
        %v2211 = vpop.f32.mrf.mxu0
        %v2212 = vpop.f32.mrf.mxu0
        %v2213 = vadd.f32 %v1669, %v2212
        %v2214 = vpop.f32.mrf.mxu0
        %2215 = vmatprep.mubr.bf16.mxu0 %v1609
        %2216 = vmatmul.mubr.bf16.gmra.mxu0 %v1608
        %v2217 = vpop.f32.mrf.mxu0
        %v2218 = vadd.f32 %v1669, %v2217
        %v2219 = vpop.f32.mrf.mxu0
        %v2220 = vpop.f32.mrf.mxu0
        %v2221 = vadd.f32 %v1669, %v2220
        %v2222 = vpop.f32.mrf.mxu0
        %2223 = vmatprep.mubr.bf16.mxu0 %v1611
        %2224 = vmatmul.mubr.bf16.gmra.mxu0 %v1610
        %v2225 = vpop.f32.mrf.mxu0
        %v2226 = vadd.f32 %v1669, %v2225
        %v2227 = vpop.f32.mrf.mxu0
        %v2228 = vpop.f32.mrf.mxu0
        %v2229 = vadd.f32 %v1669, %v2228
        %v2230 = vpop.f32.mrf.mxu0
        %2231 = vmatprep.mubr.bf16.mxu0 %v1613
        %2232 = vmatmul.mubr.bf16.gmra.mxu0 %v1612
        %v2233 = vpop.f32.mrf.mxu0
        %v2234 = vadd.f32 %v1669, %v2233
        %v2235 = vpop.f32.mrf.mxu0
        %v2236 = vpop.f32.mrf.mxu0
        %v2237 = vadd.f32 %v1669, %v2236
        %v2238 = vpop.f32.mrf.mxu0
        %2239 = vmatprep.mubr.bf16.mxu0 %v1615
        %2240 = vmatmul.mubr.bf16.gmra.mxu0 %v1614
        %v2241 = vpop.f32.mrf.mxu0
        %v2242 = vadd.f32 %v1669, %v2241
        %v2243 = vpop.f32.mrf.mxu0
        %v2244 = vpop.f32.mrf.mxu0
        %v2245 = vadd.f32 %v1669, %v2244
        %v2246 = vpop.f32.mrf.mxu0
        %2247 = vmatprep.mubr.bf16.mxu0 %v1617
        %2248 = vmatmul.mubr.bf16.gmra.mxu0 %v1616
        %v2249 = vpop.f32.mrf.mxu0
        %v2250 = vadd.f32 %v1669, %v2249
        %v2251 = vpop.f32.mrf.mxu0
        %v2252 = vpop.f32.mrf.mxu0
        %v2253 = vadd.f32 %v1669, %v2252
        %v2254 = vpop.f32.mrf.mxu0
        %2255 = vmatprep.mubr.bf16.mxu0 %v1619
        %2256 = vmatmul.mubr.bf16.gmra.mxu0 %v1618
        %v2257 = vpop.f32.mrf.mxu0
        %v2258 = vadd.f32 %v1669, %v2257
        %v2259 = vpop.f32.mrf.mxu0
        %v2260 = vpop.f32.mrf.mxu0
        %v2261 = vadd.f32 %v1669, %v2260
        %v2262 = vpop.f32.mrf.mxu0
        %2263 = vmatprep.mubr.bf16.mxu0 %v1621
        %2264 = vmatmul.mubr.bf16.gmra.mxu0 %v1620
        %v2265 = vpop.f32.mrf.mxu0
        %v2266 = vadd.f32 %v1669, %v2265
        %v2267 = vpop.f32.mrf.mxu0
        %v2268 = vpop.f32.mrf.mxu0
        %v2269 = vadd.f32 %v1669, %v2268
        %v2270 = vpop.f32.mrf.mxu0
        %2271 = vmatprep.mubr.bf16.mxu0 %v1623
        %2272 = vmatmul.mubr.bf16.gmra.mxu0 %v1622
        %v2273 = vpop.f32.mrf.mxu0
        %v2274 = vadd.f32 %v1669, %v2273
        %v2275 = vpop.f32.mrf.mxu0
        %v2276 = vpop.f32.mrf.mxu0
        %v2277 = vadd.f32 %v1669, %v2276
        %v2278 = vpop.f32.mrf.mxu0
        %2279 = vmatprep.mubr.bf16.mxu0 %v1625
        %2280 = vmatmul.mubr.bf16.gmra.mxu0 %v1624
        %v2281 = vpop.f32.mrf.mxu0
        %v2282 = vadd.f32 %v1669, %v2281
        %v2283 = vpop.f32.mrf.mxu0
        %v2284 = vpop.f32.mrf.mxu0
        %v2285 = vadd.f32 %v1669, %v2284
        %v2286 = vpop.f32.mrf.mxu0
        %2287 = vmatprep.mubr.bf16.mxu0 %v1627
        %2288 = vmatmul.mubr.bf16.gmra.mxu0 %v1626
        %v2289 = vpop.f32.mrf.mxu0
        %v2290 = vadd.f32 %v1669, %v2289
        %v2291 = vpop.f32.mrf.mxu0
        %v2292 = vpop.f32.mrf.mxu0
        %v2293 = vadd.f32 %v1669, %v2292
        %v2294 = vpop.f32.mrf.mxu0
        %2295 = vmatprep.mubr.bf16.mxu0 %v1629
        %2296 = vmatmul.mubr.bf16.gmra.mxu0 %v1628
        %v2297 = vpop.f32.mrf.mxu0
        %v2298 = vadd.f32 %v1669, %v2297
        %v2299 = vpop.f32.mrf.mxu0
        %v2300 = vpop.f32.mrf.mxu0
        %v2301 = vadd.f32 %v1669, %v2300
        %v2302 = vpop.f32.mrf.mxu0
        %2303 = vmatprep.mubr.bf16.mxu0 %v1631
        %2304 = vmatmul.mubr.bf16.gmra.mxu0 %v1630
        %v2305 = vpop.f32.mrf.mxu0
        %v2306 = vadd.f32 %v1669, %v2305
        %v2307 = vpop.f32.mrf.mxu0
        %v2308 = vpop.f32.mrf.mxu0
        %v2309 = vadd.f32 %v1669, %v2308
        %v2310 = vpop.f32.mrf.mxu0
        %2311 = vdwg.mxu0
        %2312 = vst [vmem:[%s271] sm:$0xff] %v1802
        %2313 = vst [vmem:[%s271 + $0x8] sm:$0xff] %v1805
        %2314 = vst [vmem:[%s271 + $0x10] sm:$0xff] %v1810
        %2315 = vst [vmem:[%s271 + $0x18] sm:$0xff] %v1813
        %2316 = vst [vmem:[%s271 + $0x20] sm:$0xff] %v1818
        %2317 = vst [vmem:[%s271 + $0x28] sm:$0xff] %v1821
        %2318 = vst [vmem:[%s271 + $0x30] sm:$0xff] %v1826
        %2319 = vst [vmem:[%s271 + $0x38] sm:$0xff] %v1829
        %2320 = vst [vmem:[%s271 + $0x40] sm:$0xff] %v1834
        %2321 = vst [vmem:[%s271 + $0x48] sm:$0xff] %v1837
        %2322 = vst [vmem:[%s271 + $0x50] sm:$0xff] %v1842
        %2323 = vst [vmem:[%s271 + $0x58] sm:$0xff] %v1845
        %2324 = vst [vmem:[%s271 + $0x60] sm:$0xff] %v1850
        %2325 = vst [vmem:[%s271 + $0x68] sm:$0xff] %v1853
        %2326 = vst [vmem:[%s271 + $0x70] sm:$0xff] %v1858
        %2327 = vst [vmem:[%s271 + $0x78] sm:$0xff] %v1861
        %2328 = vst [vmem:[%s271 + $0x80] sm:$0xff] %v1866
        %2329 = vst [vmem:[%s271 + $0x88] sm:$0xff] %v1869
        %2330 = vst [vmem:[%s271 + $0x90] sm:$0xff] %v1874
        %2331 = vst [vmem:[%s271 + $0x98] sm:$0xff] %v1877
        %2332 = vst [vmem:[%s271 + $0xa0] sm:$0xff] %v1882
        %2333 = vst [vmem:[%s271 + $0xa8] sm:$0xff] %v1885
        %2334 = vst [vmem:[%s271 + $0xb0] sm:$0xff] %v1890
        %2335 = vst [vmem:[%s271 + $0xb8] sm:$0xff] %v1893
        %2336 = vst [vmem:[%s271 + $0xc0] sm:$0xff] %v1898
        %2337 = vst [vmem:[%s271 + $0xc8] sm:$0xff] %v1901
        %2338 = vst [vmem:[%s271 + $0xd0] sm:$0xff] %v1906
        %2339 = vst [vmem:[%s271 + $0xd8] sm:$0xff] %v1909
        %2340 = vst [vmem:[%s271 + $0xe0] sm:$0xff] %v1914
        %2341 = vst [vmem:[%s271 + $0xe8] sm:$0xff] %v1917
        %2342 = vst [vmem:[%s271 + $0xf0] sm:$0xff] %v1922
        %2343 = vst [vmem:[%s271 + $0xf8] sm:$0xff] %v1925
        %2344 = vst [vmem:[%s271 + $0x100] sm:$0xff] %v1930
        %2345 = vst [vmem:[%s271 + $0x108] sm:$0xff] %v1933
        %2346 = vst [vmem:[%s271 + $0x110] sm:$0xff] %v1938
        %2347 = vst [vmem:[%s271 + $0x118] sm:$0xff] %v1941
        %2348 = vst [vmem:[%s271 + $0x120] sm:$0xff] %v1946
        %2349 = vst [vmem:[%s271 + $0x128] sm:$0xff] %v1949
        %2350 = vst [vmem:[%s271 + $0x130] sm:$0xff] %v1954
        %2351 = vst [vmem:[%s271 + $0x138] sm:$0xff] %v1957
        %2352 = vst [vmem:[%s271 + $0x140] sm:$0xff] %v1962
        %2353 = vst [vmem:[%s271 + $0x148] sm:$0xff] %v1965
        %2354 = vst [vmem:[%s271 + $0x150] sm:$0xff] %v1970
        %2355 = vst [vmem:[%s271 + $0x158] sm:$0xff] %v1973
        %2356 = vst [vmem:[%s271 + $0x160] sm:$0xff] %v1978
        %2357 = vst [vmem:[%s271 + $0x168] sm:$0xff] %v1981
        %2358 = vst [vmem:[%s271 + $0x170] sm:$0xff] %v1986
        %2359 = vst [vmem:[%s271 + $0x178] sm:$0xff] %v1989
        %2360 = vst [vmem:[%s271 + $0x180] sm:$0xff] %v1994
        %2361 = vst [vmem:[%s271 + $0x188] sm:$0xff] %v1997
        %2362 = vst [vmem:[%s271 + $0x190] sm:$0xff] %v2002
        %2363 = vst [vmem:[%s271 + $0x198] sm:$0xff] %v2005
        %2364 = vst [vmem:[%s271 + $0x1a0] sm:$0xff] %v2010
        %2365 = vst [vmem:[%s271 + $0x1a8] sm:$0xff] %v2013
        %2366 = vst [vmem:[%s271 + $0x1b0] sm:$0xff] %v2018
        %2367 = vst [vmem:[%s271 + $0x1b8] sm:$0xff] %v2021
        %2368 = vst [vmem:[%s271 + $0x1c0] sm:$0xff] %v2026
        %2369 = vst [vmem:[%s271 + $0x1c8] sm:$0xff] %v2029
        %2370 = vst [vmem:[%s271 + $0x1d0] sm:$0xff] %v2034
        %2371 = vst [vmem:[%s271 + $0x1d8] sm:$0xff] %v2037
        %2372 = vst [vmem:[%s271 + $0x1e0] sm:$0xff] %v2042
        %2373 = vst [vmem:[%s271 + $0x1e8] sm:$0xff] %v2045
        %2374 = vst [vmem:[%s271 + $0x1f0] sm:$0xff] %v2050
        %2375 = vst [vmem:[%s271 + $0x1f8] sm:$0xff] %v2053
        %2376 = vst [vmem:[%s271 + $0x200] sm:$0xff] %v2058
        %2377 = vst [vmem:[%s271 + $0x208] sm:$0xff] %v2061
        %2378 = vst [vmem:[%s271 + $0x210] sm:$0xff] %v2066
        %2379 = vst [vmem:[%s271 + $0x218] sm:$0xff] %v2069
        %2380 = vst [vmem:[%s271 + $0x220] sm:$0xff] %v2074
        %2381 = vst [vmem:[%s271 + $0x228] sm:$0xff] %v2077
        %2382 = vst [vmem:[%s271 + $0x230] sm:$0xff] %v2082
        %2383 = vst [vmem:[%s271 + $0x238] sm:$0xff] %v2085
        %2384 = vst [vmem:[%s271 + $0x240] sm:$0xff] %v2090
        %2385 = vst [vmem:[%s271 + $0x248] sm:$0xff] %v2093
        %2386 = vst [vmem:[%s271 + $0x250] sm:$0xff] %v2098
        %2387 = vst [vmem:[%s271 + $0x258] sm:$0xff] %v2101
        %2388 = vst [vmem:[%s271 + $0x260] sm:$0xff] %v2106
        %2389 = vst [vmem:[%s271 + $0x268] sm:$0xff] %v2109
        %2390 = vst [vmem:[%s271 + $0x270] sm:$0xff] %v2114
        %2391 = vst [vmem:[%s271 + $0x278] sm:$0xff] %v2117
        %2392 = vst [vmem:[%s271 + $0x280] sm:$0xff] %v2122
        %2393 = vst [vmem:[%s271 + $0x288] sm:$0xff] %v2125
        %2394 = vst [vmem:[%s271 + $0x290] sm:$0xff] %v2130
        %2395 = vst [vmem:[%s271 + $0x298] sm:$0xff] %v2133
        %2396 = vst [vmem:[%s271 + $0x2a0] sm:$0xff] %v2138
        %2397 = vst [vmem:[%s271 + $0x2a8] sm:$0xff] %v2141
        %2398 = vst [vmem:[%s271 + $0x2b0] sm:$0xff] %v2146
        %2399 = vst [vmem:[%s271 + $0x2b8] sm:$0xff] %v2149
        %2400 = vst [vmem:[%s271 + $0x2c0] sm:$0xff] %v2154
        %2401 = vst [vmem:[%s271 + $0x2c8] sm:$0xff] %v2157
        %2402 = vst [vmem:[%s271 + $0x2d0] sm:$0xff] %v2162
        %2403 = vst [vmem:[%s271 + $0x2d8] sm:$0xff] %v2165
        %2404 = vst [vmem:[%s271 + $0x2e0] sm:$0xff] %v2170
        %2405 = vst [vmem:[%s271 + $0x2e8] sm:$0xff] %v2173
        %2406 = vst [vmem:[%s271 + $0x2f0] sm:$0xff] %v2178
        %2407 = vst [vmem:[%s271 + $0x2f8] sm:$0xff] %v2181
        %2408 = vst [vmem:[%s271 + $0x300] sm:$0xff] %v2186
        %2409 = vst [vmem:[%s271 + $0x308] sm:$0xff] %v2189
        %2410 = vst [vmem:[%s271 + $0x310] sm:$0xff] %v2194
        %2411 = vst [vmem:[%s271 + $0x318] sm:$0xff] %v2197
        %2412 = vst [vmem:[%s271 + $0x320] sm:$0xff] %v2202
        %2413 = vst [vmem:[%s271 + $0x328] sm:$0xff] %v2205
        %2414 = vst [vmem:[%s271 + $0x330] sm:$0xff] %v2210
        %2415 = vst [vmem:[%s271 + $0x338] sm:$0xff] %v2213
        %2416 = vst [vmem:[%s271 + $0x340] sm:$0xff] %v2218
        %2417 = vst [vmem:[%s271 + $0x348] sm:$0xff] %v2221
        %2418 = vst [vmem:[%s271 + $0x350] sm:$0xff] %v2226
        %2419 = vst [vmem:[%s271 + $0x358] sm:$0xff] %v2229
        %2420 = vst [vmem:[%s271 + $0x360] sm:$0xff] %v2234
        %2421 = vst [vmem:[%s271 + $0x368] sm:$0xff] %v2237
        %2422 = vst [vmem:[%s271 + $0x370] sm:$0xff] %v2242
        %2423 = vst [vmem:[%s271 + $0x378] sm:$0xff] %v2245
        %2424 = vst [vmem:[%s271 + $0x380] sm:$0xff] %v2250
        %2425 = vst [vmem:[%s271 + $0x388] sm:$0xff] %v2253
        %2426 = vst [vmem:[%s271 + $0x390] sm:$0xff] %v2258
        %2427 = vst [vmem:[%s271 + $0x398] sm:$0xff] %v2261
        %2428 = vst [vmem:[%s271 + $0x3a0] sm:$0xff] %v2266
        %2429 = vst [vmem:[%s271 + $0x3a8] sm:$0xff] %v2269
        %2430 = vst [vmem:[%s271 + $0x3b0] sm:$0xff] %v2274
        %2431 = vst [vmem:[%s271 + $0x3b8] sm:$0xff] %v2277
        %2432 = vst [vmem:[%s271 + $0x3c0] sm:$0xff] %v2282
        %2433 = vst [vmem:[%s271 + $0x3c8] sm:$0xff] %v2285
        %2434 = vst [vmem:[%s271 + $0x3d0] sm:$0xff] %v2290
        %2435 = vst [vmem:[%s271 + $0x3d8] sm:$0xff] %v2293
        %2436 = vst [vmem:[%s271 + $0x3e0] sm:$0xff] %v2298
        %2437 = vst [vmem:[%s271 + $0x3e8] sm:$0xff] %v2301
        %2438 = vst [vmem:[%s271 + $0x3f0] sm:$0xff] %v2306
        %2439 = vst [vmem:[%s271 + $0x3f8] sm:$0xff] %v2309
        %s2440 = sand.u32 %s141, 1
        %s2441 = scalar_lea.sflag [#allocation4], %s2440
        %s2442 = sand.u32 %s141, 1
        %s2443 = smul.addr %s2442, 1024
        %s2444 = scalar_lea.vmem [#allocation8], %s2443
        // Predicated region
        $region53: #{tpu_custom_call.1} parent=39 // pred_check
          %p2445 = pneg %p151
        $region54: #{tpu_custom_call.1} parent=39 // pred_check_branch
          %2447 = sbr.rel (%p2445) target = $region56
        $region55: #{tpu_custom_call.1} parent=39 // pred_region
          %s2448 = smul.u32 128, %s23
          %s2450 = ssub.s32 16384, 16384
          %2451 = vsyncadd %s2441, %s2450
          %s2452 = smul.addr %s2448, 128
          %s2453 = scalar_lea.hbm %s5, %s2452
          %s2454 = sshll.u32 %s2444, 4
          %s2455 = int_to_ptr.vmem [resolvable:$true] %s2454
          %2460 = dma.vmem_to_hbm [thread:$0]  %s2455, 16384, %s2453, %s2441, 128, 128, 8
        $region56: #{tpu_custom_call.1} parent=39 // pred_fallthru
          _
      $region40: #{tpu_custom_call.1} parent=5 // pred_fallthru
        _
      %p2461 = scmp.le.s32.totalorder 2, %s18
      // Predicated region
      $region57: #{tpu_custom_call.1} parent=5 // pred_check
        %p2462 = pneg %p2461
      $region58: #{tpu_custom_call.1} parent=5 // pred_check_branch
        %2464 = sbr.rel (%p2462) target = $region60
      $region59: #{tpu_custom_call.1} parent=5 // pred_region
        %s2465 = ssub.s32 %s18, 2
        // Predicated region
        $region61: #{tpu_custom_call.1} parent=59 // pred_check
          %p2466 = pneg %p157
        $region62: #{tpu_custom_call.1} parent=59 // pred_check_branch
          %2468 = sbr.rel (%p2466) target = $region64
        $region63: #{tpu_custom_call.1} parent=59 // pred_region
          %s2469 = sand.u32 %s142, 1
          %s2470 = scalar_lea.sflag [#allocation4], %s2469
          %s2471 = sand.u32 %s142, 1
          %s2472 = smul.addr %s2471, 1024
          %s2473 = scalar_lea.vmem [#allocation8], %s2472
          %2474 = dma.done %s2470, 16384
        $region64: #{tpu_custom_call.1} parent=59 // pred_fallthru
          _
      $region60: #{tpu_custom_call.1} parent=5 // pred_fallthru
        _
    $region6: #{tpu_custom_call.1} parent=1 // loop_footer
      %s22 = sadd.s32 1, %s18
    $region7: #{tpu_custom_call.1} parent=1 // loop_footer_branch
      %17 = sbr.rel target = $region3
    $region8: #{tpu_custom_call.1} parent=1 // loop_exit
      _
    %2475 = vsyncpa [#allocation3], 1
    %s2476 = scalar_lea.sflag [#allocation3], 1
    %2477 = vsyncpa %s2476, 1
    %2478 = vsyncpa [#allocation6], 1
    %2479 = vsyncpa [#allocation4], 1
    %s2480 = scalar_lea.sflag [#allocation4], 1
    %2481 = vsyncpa %s2480, 1

</llo_original>
